<compile_context>
chip_gen: v5e
topology: v5e:2x2
jax: 0.10.0
libtpu: 0.0.40
codegen_flags: <defaults>
</compile_context>

<pallas_src>
import functools

import jax
import jax.numpy as jnp
from jax.experimental import pallas as pl
from jax.experimental.pallas import tpu as pltpu


def _round_up(x, m):
    return (x + m - 1) // m * m


def _vif_ssim_kernel(vis_ref, inf_ref, fus_ref, out_ref, cat_ref, mid_ref, *,
                     k, c, t_imgs, ho, wo):
    """One grid step: block-pool + SSIM for t_imgs images -> (1, wo) partial sum."""
    hp = vis_ref.shape[1]
    wp = vis_ref.shape[2]
    T = t_imgs
    nplanes = 8 * T

    inv_k = jnp.float32(1.0 / k)
    zero = jnp.float32(0.0)

    # Block-averaging matrices generated in-kernel (avoids two padded HBM DMAs).
    # Rows/cols beyond Ho*k / Wo*k (incl. padding) get zero weight, matching the
    # stride-k conv2d crop in the reference exactly.
    src_h = jax.lax.broadcasted_iota(jnp.int32, (ho, hp), 1)   # source row index
    blk_h = jax.lax.broadcasted_iota(jnp.int32, (ho, hp), 0)   # pooled row index
    ah = jnp.where((src_h >= blk_h * k) & (src_h < (blk_h + 1) * k), inv_k, zero)

    src_w = jax.lax.broadcasted_iota(jnp.int32, (wp, wo), 0)   # source col index
    blk_w = jax.lax.broadcasted_iota(jnp.int32, (wp, wo), 1)   # pooled col index
    awt = jnp.where((src_w >= blk_w * k) & (src_w < (blk_w + 1) * k), inv_k, zero)

    # 1) Write the 8*T planes into ONE concatenated scratch (hp, 8*T*wp).
    #    Column block j = p*T + t (quantity-major) so that after the restack,
    #    quantity p is a contiguous row slab of m2. Each product is computed and
    #    stored immediately -> only one extra plane live at a time.
    for t in range(T):
        v = vis_ref[t]                     # (hp, wp) f32
        i = inf_ref[t]
        f = fus_ref[t]

        def put(p, val, _t=t):
            j = p * T + _t
            cat_ref[:, j * wp:(j + 1) * wp] = val

        put(0, v)
        put(1, i)
        put(2, f)
        put(3, v * v)
        put(4, i * i)
        put(5, f * f)
        put(6, v * f)
        put(7, i * f)

    # 2) Row (H-direction) block averaging: one big matmul, N = 8*T*wp.
    m1 = jnp.dot(ah, cat_ref[...], preferred_element_type=jnp.float32)   # (ho, 8T*wp)

    # 3) Restack the column blocks vertically (lane-aligned 128-wide slices) so
    #    the W-direction averaging is also a single matmul with M = 8*T*ho.
    for j in range(nplanes):
        mid_ref[j * ho:(j + 1) * ho, :] = m1[:, j * wp:(j + 1) * wp]

    m2 = jnp.dot(mid_ref[...], awt, preferred_element_type=jnp.float32)  # (8T*ho, wo)

    # 4) Slice the 8 pooled quantities: each is a contiguous (T*ho, wo) slab.
    g = T * ho

    def q(p):
        return m2[p * g:(p + 1) * g, :]

    mu_v, mu_i, mu_f = q(0), q(1), q(2)
    m_vv, m_ii, m_ff = q(3), q(4), q(5)
    m_vf, m_if = q(6), q(7)

    C = jnp.float32(c)
    var_v = jnp.abs(m_vv - mu_v * mu_v)
    var_i = jnp.abs(m_ii - mu_i * mu_i)
    var_f = jnp.abs(m_ff - mu_f * mu_f)
    cov_vf = m_vf - mu_v * mu_f
    cov_if = m_if - mu_i * mu_f

    # SSIM ratios: divisions moved to the EUP slot via approximate reciprocal.
    l_vf = (2.0 * mu_v * mu_f + C) * pl.reciprocal(mu_v * mu_v + mu_f * mu_f + C, approx=True)
    l_if = (2.0 * mu_i * mu_f + C) * pl.reciprocal(mu_i * mu_i + mu_f * mu_f + C, approx=True)
    s_vf = (cov_vf + C) * pl.reciprocal(var_v + var_f + C, approx=True)
    s_if = (cov_if + C) * pl.reciprocal(var_i + var_f + C, approx=True)

    score = jnp.where(mu_v > mu_i, l_vf * s_vf, l_if * s_if)    # (T*ho, wo)

    # 5) Reduce in-kernel; emit a tiny per-step partial sum (no (BC,Ho,Wo) map).
    out_ref[0] = jnp.sum(score, axis=0, keepdims=True)           # (1, wo)


def _choose_t(bc, hp, wp, t_max=8, vmem_budget_bytes=16 << 20):
    """Images per grid step: divide B*C, fit a VMEM budget, keep grid >= 2."""
    # Per image per step: 3 inputs (double-buffered) + 8 concat-scratch planes.
    per_img = (3 * 2 + 8) * hp * wp * 4
    cap = max(1, min(t_max, vmem_budget_bytes // per_img))
    if bc >= 2:
        cap = min(cap, bc // 2)          # keep >= 2 grid steps for v7x's two TCs
    t = 1
    for cand in range(1, int(cap) + 1):
        if bc % cand == 0:
            t = cand
    return t


def vif_ssim_loss(vis, inf, fus, *, kernel_size=11, c=0.0009, t_max=8):
    """vis, inf, fus: (B, C, H, W). Returns the scalar VIF-SSIM loss (f32)."""
    B, C, H, W = vis.shape
    assert inf.shape == vis.shape and fus.shape == vis.shape
    k = kernel_size
    Ho = (H - k) // k + 1
    Wo = (W - k) // k + 1
    BC = B * C

    # Pad once to (8, 128)-aligned plane sizes; padded pixels get zero weight.
    Hp = _round_up(H, 8)
    Wp = _round_up(W, 128)

    def prep(x):
        x = x.reshape(BC, H, W).astype(jnp.float32)   # upcast BEFORE squaring
        if (Hp, Wp) != (H, W):
            x = jnp.pad(x, ((0, 0), (0, Hp - H), (0, Wp - W)))
        return x

    vis_f, inf_f, fus_f = prep(vis), prep(inf), prep(fus)

    T = _choose_t(BC, Hp, Wp, t_max=t_max)
    nsteps = BC // T

    # Explicit VMEM limit with headroom (sized so it also fits v7x's 64 MiB).
    est = (3 * 2 * T * Hp * Wp          # pipelined input blocks (double-buffered)
           + Hp * 8 * T * Wp            # concatenated-plane scratch
           + 8 * T * Ho * Wp            # restack scratch
           + Ho * 8 * T * Wp) * 4       # matmul-1 result
    vmem_limit = int(min(48 << 20, max(32 << 20, est + (8 << 20))))

    kernel = functools.partial(_vif_ssim_kernel, k=k, c=c, t_imgs=T, ho=Ho, wo=Wo)

    partial_sums = pl.pallas_call(
        kernel,
        out_shape=jax.ShapeDtypeStruct((nsteps, 1, Wo), jnp.float32),
        grid_spec=pltpu.PrefetchScalarGridSpec(
            num_scalar_prefetch=0,
            grid=(nsteps,),
            in_specs=[
                # NOTE(v5e): if profiling shows exposed DMA for very large
                # planes, add pipeline_mode=pl.Buffered(3) to these specs.
                pl.BlockSpec((T, Hp, Wp), lambda b: (b, 0, 0)),   # Vis
                pl.BlockSpec((T, Hp, Wp), lambda b: (b, 0, 0)),   # Inf
                pl.BlockSpec((T, Hp, Wp), lambda b: (b, 0, 0)),   # Fused
            ],
            out_specs=pl.BlockSpec((1, 1, Wo), lambda b: (b, 0, 0)),
            scratch_shapes=[
                pltpu.VMEM((Hp, 8 * T * Wp), jnp.float32),   # concatenated planes
                pltpu.VMEM((8 * T * Ho, Wp), jnp.float32),   # restacked row-pooled planes
            ],
        ),
        compiler_params=pltpu.CompilerParams(
            dimension_semantics=("parallel",),
            vmem_limit_bytes=vmem_limit,
        ),
    )(vis_f, inf_f, fus_f)

    # Tiny finishing reduction (nsteps * Wo elements) stays in plain JAX.
    return 1.0 - jnp.sum(partial_sums) / (BC * Ho * Wo)


def _reference_loss(vis, inf, fus, kernel_size=11, c=0.0009):
    """Pure-JAX reference matching the PyTorch forward exactly."""
    k = kernel_size
    B, C, H, W = vis.shape
    Ho, Wo = (H - k) // k + 1, (W - k) // k + 1

    def bmean(x):
        x = x[:, :, :Ho * k, :Wo * k]
        x = x.reshape(B, C, Ho, k, Wo, k)
        return x.mean(axis=(3, 5))

    mu_v, mu_i, mu_f = bmean(vis), bmean(inf), bmean(fus)
    var_v = jnp.abs(bmean(vis * vis) - mu_v ** 2)
    var_i = jnp.abs(bmean(inf * inf) - mu_i ** 2)
    var_f = jnp.abs(bmean(fus * fus) - mu_f ** 2)
    cov_vf = bmean(vis * fus) - mu_v * mu_f
    cov_if = bmean(inf * fus) - mu_i * mu_f
    Cc = c
    l_vf = (2 * mu_v * mu_f + Cc) / (mu_v ** 2 + mu_f ** 2 + Cc)
    l_if = (2 * mu_i * mu_f + Cc) / (mu_i ** 2 + mu_f ** 2 + Cc)
    s_vf = (cov_vf + Cc) / (var_v + var_f + Cc)
    s_if = (cov_if + Cc) / (var_i + var_f + Cc)
    score = jnp.where(mu_v > mu_i, l_vf * s_vf, l_if * s_if)
    return 1.0 - jnp.mean(score)


if __name__ == "__main__":
    # Small shapes consistent with the module defaults:
    # num_channels=1, kernal_size=11, spatial = 4 blocks of 11 = 44.
    B, C, H, W = 4, 1, 44, 44
    K = 11

    key = jax.random.PRNGKey(0)
    k1, k2, k3 = jax.random.split(key, 3)
    vis = jax.random.uniform(k1, (B, C, H, W), dtype=jnp.float32)
    inf = jax.random.uniform(k2, (B, C, H, W), dtype=jnp.float32)
    fus = jax.random.uniform(k3, (B, C, H, W), dtype=jnp.float32)

    loss = vif_ssim_loss(vis, inf, fus, kernel_size=K, c=0.0009)
    loss = jax.block_until_ready(loss)

    ref = _reference_loss(vis, inf, fus, kernel_size=K, c=0.0009)
    # Tolerance slightly relaxed because the SSIM ratios use the EUP's
    # approximate reciprocal (per perf feedback).
    assert jnp.allclose(loss, ref, atol=5e-3, rtol=5e-3), (loss, ref)

    print("KERNEL_OK")
</pallas_src>

<mosaic_0001>
module attributes {stable_mosaic.version = 11 : i64} {
  func.func @_vif_ssim_kernel(%arg0: i32, %arg1: memref<2x48x128xf32, #tpu.memory_space<vmem>>, %arg2: memref<2x48x128xf32, #tpu.memory_space<vmem>>, %arg3: memref<2x48x128xf32, #tpu.memory_space<vmem>>, %arg4: memref<1x1x4xf32, #tpu.memory_space<vmem>>, %arg5: memref<48x2048xf32, #tpu.memory_space<vmem>>, %arg6: memref<64x128xf32, #tpu.memory_space<vmem>>) attributes {dimension_semantics = [#tpu.dimension_semantics<parallel>], iteration_bounds = array<i64: 2>, scalar_prefetch = 0 : i64, scratch_operands = 2 : i64, tpu.core_type = #tpu.core_type<tc>, window_params = [{transform_indices = @transform_0, window_bounds = array<i64: 2, 48, 128>}, {transform_indices = @transform_1, window_bounds = array<i64: 2, 48, 128>}, {transform_indices = @transform_2, window_bounds = array<i64: 2, 48, 128>}, {transform_indices = @transform_3, window_bounds = array<i64: 1, 1, 4>}]} {
    %0 = tpu.iota {dimensions = array<i32: 1>} : vector<4x48xi32>
    %1 = tpu.iota {dimensions = array<i32: 0>} : vector<4x48xi32>
    %c11_i32 = arith.constant 11 : i32
    %2 = vector.broadcast %c11_i32 : i32 to vector<4x48xi32>
    %3 = arith.muli %1, %2 : vector<4x48xi32>
    %4 = arith.cmpi sge, %0, %3 : vector<4x48xi32>
    %c1_i32 = arith.constant 1 : i32
    %5 = vector.broadcast %c1_i32 : i32 to vector<4x48xi32>
    %6 = arith.addi %1, %5 : vector<4x48xi32>
    %c11_i32_0 = arith.constant 11 : i32
    %7 = vector.broadcast %c11_i32_0 : i32 to vector<4x48xi32>
    %8 = arith.muli %6, %7 : vector<4x48xi32>
    %9 = arith.cmpi slt, %0, %8 : vector<4x48xi32>
    %10 = arith.andi %4, %9 : vector<4x48xi1>
    %cst = arith.constant 0.0909090936 : f32
    %cst_1 = arith.constant 0.000000e+00 : f32
    %11 = vector.broadcast %cst : f32 to vector<4x48xf32>
    %12 = vector.broadcast %cst_1 : f32 to vector<4x48xf32>
    %13 = arith.select %10, %11, %12 : vector<4x48xi1>, vector<4x48xf32>
    %14 = tpu.iota {dimensions = array<i32: 0>} : vector<128x4xi32>
    %15 = tpu.iota {dimensions = array<i32: 1>} : vector<128x4xi32>
    %c11_i32_2 = arith.constant 11 : i32
    %16 = vector.broadcast %c11_i32_2 : i32 to vector<128x4xi32>
    %17 = arith.muli %15, %16 : vector<128x4xi32>
    %18 = arith.cmpi sge, %14, %17 : vector<128x4xi32>
    %c1_i32_3 = arith.constant 1 : i32
    %19 = vector.broadcast %c1_i32_3 : i32 to vector<128x4xi32>
    %20 = arith.addi %15, %19 : vector<128x4xi32>
    %c11_i32_4 = arith.constant 11 : i32
    %21 = vector.broadcast %c11_i32_4 : i32 to vector<128x4xi32>
    %22 = arith.muli %20, %21 : vector<128x4xi32>
    %23 = arith.cmpi slt, %14, %22 : vector<128x4xi32>
    %24 = arith.andi %18, %23 : vector<128x4xi1>
    %cst_5 = arith.constant 0.0909090936 : f32
    %cst_6 = arith.constant 0.000000e+00 : f32
    %25 = vector.broadcast %cst_5 : f32 to vector<128x4xf32>
    %26 = vector.broadcast %cst_6 : f32 to vector<128x4xf32>
    %27 = arith.select %24, %25, %26 : vector<128x4xi1>, vector<128x4xf32>
    %c0 = arith.constant 0 : index
    %c0_7 = arith.constant 0 : index
    %c0_8 = arith.constant 0 : index
    %28 = vector.load %arg1[%c0, %c0_7, %c0_8] : memref<2x48x128xf32, #tpu.memory_space<vmem>>, vector<1x48x128xf32>
    %29 = vector.shape_cast %28 : vector<1x48x128xf32> to vector<48x128xf32>
    %c0_9 = arith.constant 0 : index
    %c0_10 = arith.constant 0 : index
    %c0_11 = arith.constant 0 : index
    %30 = vector.load %arg2[%c0_9, %c0_10, %c0_11] : memref<2x48x128xf32, #tpu.memory_space<vmem>>, vector<1x48x128xf32>
    %31 = vector.shape_cast %30 : vector<1x48x128xf32> to vector<48x128xf32>
    %c0_12 = arith.constant 0 : index
    %c0_13 = arith.constant 0 : index
    %c0_14 = arith.constant 0 : index
    %32 = vector.load %arg3[%c0_12, %c0_13, %c0_14] : memref<2x48x128xf32, #tpu.memory_space<vmem>>, vector<1x48x128xf32>
    %33 = vector.shape_cast %32 : vector<1x48x128xf32> to vector<48x128xf32>
    %c0_15 = arith.constant 0 : index
    %c0_16 = arith.constant 0 : index
    %34 = vector.load %arg5[%c0_15, %c0_16] : memref<48x2048xf32, #tpu.memory_space<vmem>>, vector<48x128xf32>
    tpu.vector_store %arg5[%c0_15, %c0_16], %29 {strides = array<i32>} : memref<48x2048xf32, #tpu.memory_space<vmem>>, vector<48x128xf32>,
    %c0_17 = arith.constant 0 : index
    %c256 = arith.constant 256 : index
    %35 = vector.load %arg5[%c0_17, %c256] : memref<48x2048xf32, #tpu.memory_space<vmem>>, vector<48x128xf32>
    tpu.vector_store %arg5[%c0_17, %c256], %31 {strides = array<i32>} : memref<48x2048xf32, #tpu.memory_space<vmem>>, vector<48x128xf32>,
    %c0_18 = arith.constant 0 : index
    %c512 = arith.constant 512 : index
    %36 = vector.load %arg5[%c0_18, %c512] : memref<48x2048xf32, #tpu.memory_space<vmem>>, vector<48x128xf32>
    tpu.vector_store %arg5[%c0_18, %c512], %33 {strides = array<i32>} : memref<48x2048xf32, #tpu.memory_space<vmem>>, vector<48x128xf32>,
    %37 = arith.mulf %29, %29 : vector<48x128xf32>
    %c0_19 = arith.constant 0 : index
    %c768 = arith.constant 768 : index
    %38 = vector.load %arg5[%c0_19, %c768] : memref<48x2048xf32, #tpu.memory_space<vmem>>, vector<48x128xf32>
    tpu.vector_store %arg5[%c0_19, %c768], %37 {strides = array<i32>} : memref<48x2048xf32, #tpu.memory_space<vmem>>, vector<48x128xf32>,
    %39 = arith.mulf %31, %31 : vector<48x128xf32>
    %c0_20 = arith.constant 0 : index
    %c1024 = arith.constant 1024 : index
    %40 = vector.load %arg5[%c0_20, %c1024] : memref<48x2048xf32, #tpu.memory_space<vmem>>, vector<48x128xf32>
    tpu.vector_store %arg5[%c0_20, %c1024], %39 {strides = array<i32>} : memref<48x2048xf32, #tpu.memory_space<vmem>>, vector<48x128xf32>,
    %41 = arith.mulf %33, %33 : vector<48x128xf32>
    %c0_21 = arith.constant 0 : index
    %c1280 = arith.constant 1280 : index
    %42 = vector.load %arg5[%c0_21, %c1280] : memref<48x2048xf32, #tpu.memory_space<vmem>>, vector<48x128xf32>
    tpu.vector_store %arg5[%c0_21, %c1280], %41 {strides = array<i32>} : memref<48x2048xf32, #tpu.memory_space<vmem>>, vector<48x128xf32>,
    %43 = arith.mulf %29, %33 : vector<48x128xf32>
    %c0_22 = arith.constant 0 : index
    %c1536 = arith.constant 1536 : index
    %44 = vector.load %arg5[%c0_22, %c1536] : memref<48x2048xf32, #tpu.memory_space<vmem>>, vector<48x128xf32>
    tpu.vector_store %arg5[%c0_22, %c1536], %43 {strides = array<i32>} : memref<48x2048xf32, #tpu.memory_space<vmem>>, vector<48x128xf32>,
    %45 = arith.mulf %31, %33 : vector<48x128xf32>
    %c0_23 = arith.constant 0 : index
    %c1792 = arith.constant 1792 : index
    %46 = vector.load %arg5[%c0_23, %c1792] : memref<48x2048xf32, #tpu.memory_space<vmem>>, vector<48x128xf32>
    tpu.vector_store %arg5[%c0_23, %c1792], %45 {strides = array<i32>} : memref<48x2048xf32, #tpu.memory_space<vmem>>, vector<48x128xf32>,
    %c1 = arith.constant 1 : index
    %c0_24 = arith.constant 0 : index
    %c0_25 = arith.constant 0 : index
    %47 = vector.load %arg1[%c1, %c0_24, %c0_25] : memref<2x48x128xf32, #tpu.memory_space<vmem>>, vector<1x48x128xf32>
    %48 = vector.shape_cast %47 : vector<1x48x128xf32> to vector<48x128xf32>
    %c1_26 = arith.constant 1 : index
    %c0_27 = arith.constant 0 : index
    %c0_28 = arith.constant 0 : index
    %49 = vector.load %arg2[%c1_26, %c0_27, %c0_28] : memref<2x48x128xf32, #tpu.memory_space<vmem>>, vector<1x48x128xf32>
    %50 = vector.shape_cast %49 : vector<1x48x128xf32> to vector<48x128xf32>
    %c1_29 = arith.constant 1 : index
    %c0_30 = arith.constant 0 : index
    %c0_31 = arith.constant 0 : index
    %51 = vector.load %arg3[%c1_29, %c0_30, %c0_31] : memref<2x48x128xf32, #tpu.memory_space<vmem>>, vector<1x48x128xf32>
    %52 = vector.shape_cast %51 : vector<1x48x128xf32> to vector<48x128xf32>
    %c0_32 = arith.constant 0 : index
    %c128 = arith.constant 128 : index
    %53 = vector.load %arg5[%c0_32, %c128] : memref<48x2048xf32, #tpu.memory_space<vmem>>, vector<48x128xf32>
    tpu.vector_store %arg5[%c0_32, %c128], %48 {strides = array<i32>} : memref<48x2048xf32, #tpu.memory_space<vmem>>, vector<48x128xf32>,
    %c0_33 = arith.constant 0 : index
    %c384 = arith.constant 384 : index
    %54 = vector.load %arg5[%c0_33, %c384] : memref<48x2048xf32, #tpu.memory_space<vmem>>, vector<48x128xf32>
    tpu.vector_store %arg5[%c0_33, %c384], %50 {strides = array<i32>} : memref<48x2048xf32, #tpu.memory_space<vmem>>, vector<48x128xf32>,
    %c0_34 = arith.constant 0 : index
    %c640 = arith.constant 640 : index
    %55 = vector.load %arg5[%c0_34, %c640] : memref<48x2048xf32, #tpu.memory_space<vmem>>, vector<48x128xf32>
    tpu.vector_store %arg5[%c0_34, %c640], %52 {strides = array<i32>} : memref<48x2048xf32, #tpu.memory_space<vmem>>, vector<48x128xf32>,
    %56 = arith.mulf %48, %48 : vector<48x128xf32>
    %c0_35 = arith.constant 0 : index
    %c896 = arith.constant 896 : index
    %57 = vector.load %arg5[%c0_35, %c896] : memref<48x2048xf32, #tpu.memory_space<vmem>>, vector<48x128xf32>
    tpu.vector_store %arg5[%c0_35, %c896], %56 {strides = array<i32>} : memref<48x2048xf32, #tpu.memory_space<vmem>>, vector<48x128xf32>,
    %58 = arith.mulf %50, %50 : vector<48x128xf32>
    %c0_36 = arith.constant 0 : index
    %c1152 = arith.constant 1152 : index
    %59 = vector.load %arg5[%c0_36, %c1152] : memref<48x2048xf32, #tpu.memory_space<vmem>>, vector<48x128xf32>
    tpu.vector_store %arg5[%c0_36, %c1152], %58 {strides = array<i32>} : memref<48x2048xf32, #tpu.memory_space<vmem>>, vector<48x128xf32>,
    %60 = arith.mulf %52, %52 : vector<48x128xf32>
    %c0_37 = arith.constant 0 : index
    %c1408 = arith.constant 1408 : index
    %61 = vector.load %arg5[%c0_37, %c1408] : memref<48x2048xf32, #tpu.memory_space<vmem>>, vector<48x128xf32>
    tpu.vector_store %arg5[%c0_37, %c1408], %60 {strides = array<i32>} : memref<48x2048xf32, #tpu.memory_space<vmem>>, vector<48x128xf32>,
    %62 = arith.mulf %48, %52 : vector<48x128xf32>
    %c0_38 = arith.constant 0 : index
    %c1664 = arith.constant 1664 : index
    %63 = vector.load %arg5[%c0_38, %c1664] : memref<48x2048xf32, #tpu.memory_space<vmem>>, vector<48x128xf32>
    tpu.vector_store %arg5[%c0_38, %c1664], %62 {strides = array<i32>} : memref<48x2048xf32, #tpu.memory_space<vmem>>, vector<48x128xf32>,
    %64 = arith.mulf %50, %52 : vector<48x128xf32>
    %c0_39 = arith.constant 0 : index
    %c1920 = arith.constant 1920 : index
    %65 = vector.load %arg5[%c0_39, %c1920] : memref<48x2048xf32, #tpu.memory_space<vmem>>, vector<48x128xf32>
    tpu.vector_store %arg5[%c0_39, %c1920], %64 {strides = array<i32>} : memref<48x2048xf32, #tpu.memory_space<vmem>>, vector<48x128xf32>,
    %c0_40 = arith.constant 0 : index
    %c0_41 = arith.constant 0 : index
    %66 = vector.load %arg5[%c0_40, %c0_41] : memref<48x2048xf32, #tpu.memory_space<vmem>>, vector<48x2048xf32>
    %cst_42 = arith.constant dense<0.000000e+00> : vector<4x2048xf32>
    %67 = tpu.matmul %13, %66, %cst_42 {dimension_numbers = #tpu.dot_dimension_numbers<[1], [0], [0], [1], [0, 0, 1, 1], [], []>} : vector<4x48xf32>, vector<48x2048xf32>, vector<4x2048xf32> -> vector<4x2048xf32>
    %68 = vector.extract_strided_slice %67 {offsets = [0, 0], sizes = [4, 128], strides = [1, 1]} : vector<4x2048xf32> to vector<4x128xf32>
    %c0_43 = arith.constant 0 : index
    %c0_44 = arith.constant 0 : index
    %69 = vector.load %arg6[%c0_43, %c0_44] : memref<64x128xf32, #tpu.memory_space<vmem>>, vector<4x128xf32>
    tpu.vector_store %arg6[%c0_43, %c0_44], %68 {strides = array<i32>} : memref<64x128xf32, #tpu.memory_space<vmem>>, vector<4x128xf32>,
    %70 = vector.extract_strided_slice %67 {offsets = [0, 128], sizes = [4, 128], strides = [1, 1]} : vector<4x2048xf32> to vector<4x128xf32>
    %c4 = arith.constant 4 : index
    %c0_45 = arith.constant 0 : index
    %71 = vector.load %arg6[%c4, %c0_45] : memref<64x128xf32, #tpu.memory_space<vmem>>, vector<4x128xf32>
    tpu.vector_store %arg6[%c4, %c0_45], %70 {strides = array<i32>} : memref<64x128xf32, #tpu.memory_space<vmem>>, vector<4x128xf32>,
    %72 = vector.extract_strided_slice %67 {offsets = [0, 256], sizes = [4, 128], strides = [1, 1]} : vector<4x2048xf32> to vector<4x128xf32>
    %c8 = arith.constant 8 : index
    %c0_46 = arith.constant 0 : index
    %73 = vector.load %arg6[%c8, %c0_46] : memref<64x128xf32, #tpu.memory_space<vmem>>, vector<4x128xf32>
    tpu.vector_store %arg6[%c8, %c0_46], %72 {strides = array<i32>} : memref<64x128xf32, #tpu.memory_space<vmem>>, vector<4x128xf32>,
    %74 = vector.extract_strided_slice %67 {offsets = [0, 384], sizes = [4, 128], strides = [1, 1]} : vector<4x2048xf32> to vector<4x128xf32>
    %c12 = arith.constant 12 : index
    %c0_47 = arith.constant 0 : index
    %75 = vector.load %arg6[%c12, %c0_47] : memref<64x128xf32, #tpu.memory_space<vmem>>, vector<4x128xf32>
    tpu.vector_store %arg6[%c12, %c0_47], %74 {strides = array<i32>} : memref<64x128xf32, #tpu.memory_space<vmem>>, vector<4x128xf32>,
    %76 = vector.extract_strided_slice %67 {offsets = [0, 512], sizes = [4, 128], strides = [1, 1]} : vector<4x2048xf32> to vector<4x128xf32>
    %c16 = arith.constant 16 : index
    %c0_48 = arith.constant 0 : index
    %77 = vector.load %arg6[%c16, %c0_48] : memref<64x128xf32, #tpu.memory_space<vmem>>, vector<4x128xf32>
    tpu.vector_store %arg6[%c16, %c0_48], %76 {strides = array<i32>} : memref<64x128xf32, #tpu.memory_space<vmem>>, vector<4x128xf32>,
    %78 = vector.extract_strided_slice %67 {offsets = [0, 640], sizes = [4, 128], strides = [1, 1]} : vector<4x2048xf32> to vector<4x128xf32>
    %c20 = arith.constant 20 : index
    %c0_49 = arith.constant 0 : index
    %79 = vector.load %arg6[%c20, %c0_49] : memref<64x128xf32, #tpu.memory_space<vmem>>, vector<4x128xf32>
    tpu.vector_store %arg6[%c20, %c0_49], %78 {strides = array<i32>} : memref<64x128xf32, #tpu.memory_space<vmem>>, vector<4x128xf32>,
    %80 = vector.extract_strided_slice %67 {offsets = [0, 768], sizes = [4, 128], strides = [1, 1]} : vector<4x2048xf32> to vector<4x128xf32>
    %c24 = arith.constant 24 : index
    %c0_50 = arith.constant 0 : index
    %81 = vector.load %arg6[%c24, %c0_50] : memref<64x128xf32, #tpu.memory_space<vmem>>, vector<4x128xf32>
    tpu.vector_store %arg6[%c24, %c0_50], %80 {strides = array<i32>} : memref<64x128xf32, #tpu.memory_space<vmem>>, vector<4x128xf32>,
    %82 = vector.extract_strided_slice %67 {offsets = [0, 896], sizes = [4, 128], strides = [1, 1]} : vector<4x2048xf32> to vector<4x128xf32>
    %c28 = arith.constant 28 : index
    %c0_51 = arith.constant 0 : index
    %83 = vector.load %arg6[%c28, %c0_51] : memref<64x128xf32, #tpu.memory_space<vmem>>, vector<4x128xf32>
    tpu.vector_store %arg6[%c28, %c0_51], %82 {strides = array<i32>} : memref<64x128xf32, #tpu.memory_space<vmem>>, vector<4x128xf32>,
    %84 = vector.extract_strided_slice %67 {offsets = [0, 1024], sizes = [4, 128], strides = [1, 1]} : vector<4x2048xf32> to vector<4x128xf32>
    %c32 = arith.constant 32 : index
    %c0_52 = arith.constant 0 : index
    %85 = vector.load %arg6[%c32, %c0_52] : memref<64x128xf32, #tpu.memory_space<vmem>>, vector<4x128xf32>
    tpu.vector_store %arg6[%c32, %c0_52], %84 {strides = array<i32>} : memref<64x128xf32, #tpu.memory_space<vmem>>, vector<4x128xf32>,
    %86 = vector.extract_strided_slice %67 {offsets = [0, 1152], sizes = [4, 128], strides = [1, 1]} : vector<4x2048xf32> to vector<4x128xf32>
    %c36 = arith.constant 36 : index
    %c0_53 = arith.constant 0 : index
    %87 = vector.load %arg6[%c36, %c0_53] : memref<64x128xf32, #tpu.memory_space<vmem>>, vector<4x128xf32>
    tpu.vector_store %arg6[%c36, %c0_53], %86 {strides = array<i32>} : memref<64x128xf32, #tpu.memory_space<vmem>>, vector<4x128xf32>,
    %88 = vector.extract_strided_slice %67 {offsets = [0, 1280], sizes = [4, 128], strides = [1, 1]} : vector<4x2048xf32> to vector<4x128xf32>
    %c40 = arith.constant 40 : index
    %c0_54 = arith.constant 0 : index
    %89 = vector.load %arg6[%c40, %c0_54] : memref<64x128xf32, #tpu.memory_space<vmem>>, vector<4x128xf32>
    tpu.vector_store %arg6[%c40, %c0_54], %88 {strides = array<i32>} : memref<64x128xf32, #tpu.memory_space<vmem>>, vector<4x128xf32>,
    %90 = vector.extract_strided_slice %67 {offsets = [0, 1408], sizes = [4, 128], strides = [1, 1]} : vector<4x2048xf32> to vector<4x128xf32>
    %c44 = arith.constant 44 : index
    %c0_55 = arith.constant 0 : index
    %91 = vector.load %arg6[%c44, %c0_55] : memref<64x128xf32, #tpu.memory_space<vmem>>, vector<4x128xf32>
    tpu.vector_store %arg6[%c44, %c0_55], %90 {strides = array<i32>} : memref<64x128xf32, #tpu.memory_space<vmem>>, vector<4x128xf32>,
    %92 = vector.extract_strided_slice %67 {offsets = [0, 1536], sizes = [4, 128], strides = [1, 1]} : vector<4x2048xf32> to vector<4x128xf32>
    %c48 = arith.constant 48 : index
    %c0_56 = arith.constant 0 : index
    %93 = vector.load %arg6[%c48, %c0_56] : memref<64x128xf32, #tpu.memory_space<vmem>>, vector<4x128xf32>
    tpu.vector_store %arg6[%c48, %c0_56], %92 {strides = array<i32>} : memref<64x128xf32, #tpu.memory_space<vmem>>, vector<4x128xf32>,
    %94 = vector.extract_strided_slice %67 {offsets = [0, 1664], sizes = [4, 128], strides = [1, 1]} : vector<4x2048xf32> to vector<4x128xf32>
    %c52 = arith.constant 52 : index
    %c0_57 = arith.constant 0 : index
    %95 = vector.load %arg6[%c52, %c0_57] : memref<64x128xf32, #tpu.memory_space<vmem>>, vector<4x128xf32>
    tpu.vector_store %arg6[%c52, %c0_57], %94 {strides = array<i32>} : memref<64x128xf32, #tpu.memory_space<vmem>>, vector<4x128xf32>,
    %96 = vector.extract_strided_slice %67 {offsets = [0, 1792], sizes = [4, 128], strides = [1, 1]} : vector<4x2048xf32> to vector<4x128xf32>
    %c56 = arith.constant 56 : index
    %c0_58 = arith.constant 0 : index
    %97 = vector.load %arg6[%c56, %c0_58] : memref<64x128xf32, #tpu.memory_space<vmem>>, vector<4x128xf32>
    tpu.vector_store %arg6[%c56, %c0_58], %96 {strides = array<i32>} : memref<64x128xf32, #tpu.memory_space<vmem>>, vector<4x128xf32>,
    %98 = vector.extract_strided_slice %67 {offsets = [0, 1920], sizes = [4, 128], strides = [1, 1]} : vector<4x2048xf32> to vector<4x128xf32>
    %c60 = arith.constant 60 : index
    %c0_59 = arith.constant 0 : index
    %99 = vector.load %arg6[%c60, %c0_59] : memref<64x128xf32, #tpu.memory_space<vmem>>, vector<4x128xf32>
    tpu.vector_store %arg6[%c60, %c0_59], %98 {strides = array<i32>} : memref<64x128xf32, #tpu.memory_space<vmem>>, vector<4x128xf32>,
    %c0_60 = arith.constant 0 : index
    %c0_61 = arith.constant 0 : index
    %100 = vector.load %arg6[%c0_60, %c0_61] : memref<64x128xf32, #tpu.memory_space<vmem>>, vector<64x128xf32>
    %cst_62 = arith.constant dense<0.000000e+00> : vector<64x4xf32>
    %101 = tpu.matmul %100, %27, %cst_62 {dimension_numbers = #tpu.dot_dimension_numbers<[1], [0], [0], [1], [0, 0, 1, 1], [], []>} : vector<64x128xf32>, vector<128x4xf32>, vector<64x4xf32> -> vector<64x4xf32>
    %102 = vector.extract_strided_slice %101 {offsets = [0, 0], sizes = [8, 4], strides = [1, 1]} : vector<64x4xf32> to vector<8x4xf32>
    %103 = vector.extract_strided_slice %101 {offsets = [8, 0], sizes = [8, 4], strides = [1, 1]} : vector<64x4xf32> to vector<8x4xf32>
    %104 = vector.extract_strided_slice %101 {offsets = [16, 0], sizes = [8, 4], strides = [1, 1]} : vector<64x4xf32> to vector<8x4xf32>
    %105 = vector.extract_strided_slice %101 {offsets = [24, 0], sizes = [8, 4], strides = [1, 1]} : vector<64x4xf32> to vector<8x4xf32>
    %106 = vector.extract_strided_slice %101 {offsets = [32, 0], sizes = [8, 4], strides = [1, 1]} : vector<64x4xf32> to vector<8x4xf32>
    %107 = vector.extract_strided_slice %101 {offsets = [40, 0], sizes = [8, 4], strides = [1, 1]} : vector<64x4xf32> to vector<8x4xf32>
    %108 = vector.extract_strided_slice %101 {offsets = [48, 0], sizes = [8, 4], strides = [1, 1]} : vector<64x4xf32> to vector<8x4xf32>
    %109 = vector.extract_strided_slice %101 {offsets = [56, 0], sizes = [8, 4], strides = [1, 1]} : vector<64x4xf32> to vector<8x4xf32>
    %110 = arith.mulf %102, %102 : vector<8x4xf32>
    %111 = arith.subf %105, %110 : vector<8x4xf32>
    %112 = math.absf %111 : vector<8x4xf32>
    %113 = arith.mulf %103, %103 : vector<8x4xf32>
    %114 = arith.subf %106, %113 : vector<8x4xf32>
    %115 = math.absf %114 : vector<8x4xf32>
    %116 = arith.mulf %104, %104 : vector<8x4xf32>
    %117 = arith.subf %107, %116 : vector<8x4xf32>
    %118 = math.absf %117 : vector<8x4xf32>
    %119 = arith.mulf %102, %104 : vector<8x4xf32>
    %120 = arith.subf %108, %119 : vector<8x4xf32>
    %121 = arith.mulf %103, %104 : vector<8x4xf32>
    %122 = arith.subf %109, %121 : vector<8x4xf32>
    %cst_63 = arith.constant 2.000000e+00 : f32
    %123 = vector.broadcast %cst_63 : f32 to vector<8x4xf32>
    %124 = arith.mulf %123, %102 : vector<8x4xf32>
    %125 = arith.mulf %124, %104 : vector<8x4xf32>
    %cst_64 = arith.constant 8.99999984E-4 : f32
    %126 = vector.broadcast %cst_64 : f32 to vector<8x4xf32>
    %127 = arith.addf %125, %126 : vector<8x4xf32>
    %128 = arith.mulf %102, %102 : vector<8x4xf32>
    %129 = arith.mulf %104, %104 : vector<8x4xf32>
    %130 = arith.addf %128, %129 : vector<8x4xf32>
    %cst_65 = arith.constant 8.99999984E-4 : f32
    %131 = vector.broadcast %cst_65 : f32 to vector<8x4xf32>
    %132 = arith.addf %130, %131 : vector<8x4xf32>
    %133 = tpu.reciprocal %132 {approx = true} : vector<8x4xf32> -> vector<8x4xf32>
    %134 = arith.mulf %127, %133 : vector<8x4xf32>
    %cst_66 = arith.constant 2.000000e+00 : f32
    %135 = vector.broadcast %cst_66 : f32 to vector<8x4xf32>
    %136 = arith.mulf %135, %103 : vector<8x4xf32>
    %137 = arith.mulf %136, %104 : vector<8x4xf32>
    %cst_67 = arith.constant 8.99999984E-4 : f32
    %138 = vector.broadcast %cst_67 : f32 to vector<8x4xf32>
    %139 = arith.addf %137, %138 : vector<8x4xf32>
    %140 = arith.mulf %103, %103 : vector<8x4xf32>
    %141 = arith.mulf %104, %104 : vector<8x4xf32>
    %142 = arith.addf %140, %141 : vector<8x4xf32>
    %cst_68 = arith.constant 8.99999984E-4 : f32
    %143 = vector.broadcast %cst_68 : f32 to vector<8x4xf32>
    %144 = arith.addf %142, %143 : vector<8x4xf32>
    %145 = tpu.reciprocal %144 {approx = true} : vector<8x4xf32> -> vector<8x4xf32>
    %146 = arith.mulf %139, %145 : vector<8x4xf32>
    %cst_69 = arith.constant 8.99999984E-4 : f32
    %147 = vector.broadcast %cst_69 : f32 to vector<8x4xf32>
    %148 = arith.addf %120, %147 : vector<8x4xf32>
    %149 = arith.addf %112, %118 : vector<8x4xf32>
    %cst_70 = arith.constant 8.99999984E-4 : f32
    %150 = vector.broadcast %cst_70 : f32 to vector<8x4xf32>
    %151 = arith.addf %149, %150 : vector<8x4xf32>
    %152 = tpu.reciprocal %151 {approx = true} : vector<8x4xf32> -> vector<8x4xf32>
    %153 = arith.mulf %148, %152 : vector<8x4xf32>
    %cst_71 = arith.constant 8.99999984E-4 : f32
    %154 = vector.broadcast %cst_71 : f32 to vector<8x4xf32>
    %155 = arith.addf %122, %154 : vector<8x4xf32>
    %156 = arith.addf %115, %118 : vector<8x4xf32>
    %cst_72 = arith.constant 8.99999984E-4 : f32
    %157 = vector.broadcast %cst_72 : f32 to vector<8x4xf32>
    %158 = arith.addf %156, %157 : vector<8x4xf32>
    %159 = tpu.reciprocal %158 {approx = true} : vector<8x4xf32> -> vector<8x4xf32>
    %160 = arith.mulf %155, %159 : vector<8x4xf32>
    %161 = arith.cmpf ogt, %102, %103 : vector<8x4xf32>
    %162 = arith.mulf %134, %153 : vector<8x4xf32>
    %163 = arith.mulf %146, %160 : vector<8x4xf32>
    %164 = arith.select %161, %162, %163 : vector<8x4xi1>, vector<8x4xf32>
    %cst_73 = arith.constant dense<0.000000e+00> : vector<4xf32>
    %165 = vector.multi_reduction <add>, %164, %cst_73 [0] : vector<8x4xf32> to vector<4xf32>
    %166 = vector.shape_cast %165 : vector<4xf32> to vector<1x4xf32>
    %c0_74 = arith.constant 0 : index
    %c0_75 = arith.constant 0 : index
    %c0_76 = arith.constant 0 : index
    %167 = vector.load %arg4[%c0_74, %c0_75, %c0_76] : memref<1x1x4xf32, #tpu.memory_space<vmem>>, vector<1x1x4xf32>
    %168 = vector.shape_cast %167 : vector<1x1x4xf32> to vector<1x4xf32>
    %169 = vector.shape_cast %166 : vector<1x4xf32> to vector<1x1x4xf32>
    tpu.vector_store %arg4[%c0_74, %c0_75, %c0_76], %169 {strides = array<i32>} : memref<1x1x4xf32, #tpu.memory_space<vmem>>, vector<1x1x4xf32>,
    return
  }
  func.func @transform_0(%arg0: i32) -> (i32, i32, i32) {
    %c0_i32 = arith.constant 0 : i32
    %c0_i32_0 = arith.constant 0 : i32
    %c0_i32_1 = arith.constant 0 : i32
    return %arg0, %c0_i32, %c0_i32_0 : i32, i32, i32
  }
  func.func @transform_1(%arg0: i32) -> (i32, i32, i32) {
    %c0_i32 = arith.constant 0 : i32
    %c0_i32_0 = arith.constant 0 : i32
    %c0_i32_1 = arith.constant 0 : i32
    return %arg0, %c0_i32, %c0_i32_0 : i32, i32, i32
  }
  func.func @transform_2(%arg0: i32) -> (i32, i32, i32) {
    %c0_i32 = arith.constant 0 : i32
    %c0_i32_0 = arith.constant 0 : i32
    %c0_i32_1 = arith.constant 0 : i32
    return %arg0, %c0_i32, %c0_i32_0 : i32, i32, i32
  }
  func.func @transform_3(%arg0: i32) -> (i32, i32, i32) {
    %c0_i32 = arith.constant 0 : i32
    %c0_i32_0 = arith.constant 0 : i32
    %c0_i32_1 = arith.constant 0 : i32
    return %arg0, %c0_i32, %c0_i32_0 : i32, i32, i32
  }
}

</mosaic_0001>

<llo_original>
// kernel: tpu_custom_call.1
$region0: #{tpu_custom_call.1}
  #allocation0 [shape = 'u32[]', space=smem, size = 0x4, offset = 0x4, fixed_abs, tag = 'smem constant byte address 0x4 - core index']
  #allocation1 [shape = 'u32[72,128]{1,0:T(1,128)}', space=vmem, size = 0x9000, scoped, tag = 'internal scratch']
  #allocation2 [shape = 'f32[48,2048]{1,0:T(8,128)}', space=vmem, size = 0x60000, scoped, tag = 'scratch operand']
  #allocation3 [shape = 'f32[64,128]{1,0:T(8,128)}', space=vmem, size = 0x8000, scoped, tag = 'scratch operand']
  %s0 = inlined_call_operand.hbm [shape: f32[4,48,128], index: 0, kind: input, shape index: {}]
  %s1 = inlined_call_operand.hbm [shape: f32[4,48,128], index: 1, kind: input, shape index: {}]
  %s2 = inlined_call_operand.hbm [shape: f32[4,48,128], index: 2, kind: input, shape index: {}]
  %s3 = inlined_call_operand.hbm [shape: f32[2,1,4], index: 3, kind: output, shape index: {}]
  %s4 = sld [smem:[#allocation0]]
  $region57: #{tpu_custom_call.1} parent=0
    _
  %s6 = ssub.s32 1, %s4
  %s7 = scalar_select 0, %s6, %s4
  $region1: #{tpu_custom_call.1} parent=0
    #allocation4 [shape = 'u8[98304]{0}', space=vmem, size = 0x18000, scoped, tag = 'input window, operand 0']
    #allocation5 [shape = 's32[2]{0}', space=sflag, size = 0x8, scoped, tag = 'scoped memory for tpu_custom_call.1']
    #allocation6 [shape = 's32[2]{0}', space=sflag, size = 0x8, scoped, tag = 'scoped memory for tpu_custom_call.1']
    #allocation7 [shape = 'u8[98304]{0}', space=vmem, size = 0x18000, scoped, tag = 'input window, operand 1']
    #allocation8 [shape = 's32[2]{0}', space=sflag, size = 0x8, scoped, tag = 'scoped memory for tpu_custom_call.1']
    #allocation9 [shape = 'u8[98304]{0}', space=vmem, size = 0x18000, scoped, tag = 'input window, operand 2']
    #allocation10 [shape = 'u8[1024]{0}', space=vmem, size = 0x400, scoped, tag = 'output window, operand 0']
    %8 = vsyncpa [#allocation5], 0
    %s9 = scalar_lea.sflag [#allocation5], 1
    %10 = vsyncpa %s9, 0
    %11 = vsyncpa [#allocation8], 0
    %s12 = scalar_lea.sflag [#allocation8], 1
    %13 = vsyncpa %s12, 0
    %14 = vsyncpa [#allocation6], 0
    %s15 = scalar_lea.sflag [#allocation6], 1
    %16 = vsyncpa %s15, 0
    loop: start=0, step=1, limit=4
    $region2: #{tpu_custom_call.1} parent=1 // loop_pre_header
      _
    $region3: #{tpu_custom_call.1} parent=1 // loop_header
      %s18 = sphi 0, %s22
      %p19 = scmp.ge.s32.totalorder %s18, 4
      %s28 = sphi 0, %s30
      %s31 = sphi 0, %s28
      %s32 = sphi 0, %s31
      %s48 = sphi 0, %s32
      %s54 = sphi 0, %s56
      %s57 = sphi 0, %s54
      %s58 = sphi 0, %s57
      %s74 = sphi 0, %s58
      %s80 = sphi 0, %s82
      %s83 = sphi 0, %s80
      %s84 = sphi 0, %s83
      %s100 = sphi 0, %s84
      %s106 = sphi 0, %s108
      %s109 = sphi 0, %s106
      %s110 = sphi 0, %s109
      %s126 = sphi 0, %s110
    $region4: #{tpu_custom_call.1} parent=1 // loop_header_branch
      %21 = sbr.rel (%p19) target = $region8
    $region5: #{tpu_custom_call.1} parent=1 // loop_body
      %s23 = ssub.s32 %s18, 1
      %s24 = ssub.s32 %s18, 2
      %s25 = sadd.s32 %s18, 1
      %s26 = ssub.s32 %s18, %s25
      %p27 = scmp.eq.s32.totalorder %s26, 0
      %s29 = sadd.s32 %s28, 1
      %s30 = scalar_select %p27, %s28, %s29
      %p33 = pneg %p27
      %p34 = scmp.eq.s32.totalorder %s18, 1
      %p35 = por %p33, %p34
      %p36 = scmp.ne.s32.totalorder %s28, %s31
      %p37 = scmp.eq.s32.totalorder %s18, 0
      %p38 = por %p36, %p37
      %p39 = scmp.ne.s32.totalorder %s28, %s31
      %p40 = scmp.eq.s32.totalorder %s23, 1
      %p41 = por %p39, %p40
      %p42 = scmp.ne.s32.totalorder %s31, %s32
      %p43 = scmp.eq.s32.totalorder %s23, 0
      %p44 = por %p42, %p43
      %p45 = scmp.ne.s32.totalorder %s31, %s32
      %p46 = scmp.eq.s32.totalorder %s24, 1
      %p47 = por %p45, %p46
      %p49 = scmp.ne.s32.totalorder %s32, %s48
      %p50 = scmp.eq.s32.totalorder %s24, 0
      %p51 = por %p49, %p50
      %s52 = ssub.s32 %s18, %s25
      %p53 = scmp.eq.s32.totalorder %s52, 0
      %s55 = sadd.s32 %s54, 1
      %s56 = scalar_select %p53, %s54, %s55
      %p59 = pneg %p53
      %p60 = scmp.eq.s32.totalorder %s18, 1
      %p61 = por %p59, %p60
      %p62 = scmp.ne.s32.totalorder %s54, %s57
      %p63 = scmp.eq.s32.totalorder %s18, 0
      %p64 = por %p62, %p63
      %p65 = scmp.ne.s32.totalorder %s54, %s57
      %p66 = scmp.eq.s32.totalorder %s23, 1
      %p67 = por %p65, %p66
      %p68 = scmp.ne.s32.totalorder %s57, %s58
      %p69 = scmp.eq.s32.totalorder %s23, 0
      %p70 = por %p68, %p69
      %p71 = scmp.ne.s32.totalorder %s57, %s58
      %p72 = scmp.eq.s32.totalorder %s24, 1
      %p73 = por %p71, %p72
      %p75 = scmp.ne.s32.totalorder %s58, %s74
      %p76 = scmp.eq.s32.totalorder %s24, 0
      %p77 = por %p75, %p76
      %s78 = ssub.s32 %s18, %s25
      %p79 = scmp.eq.s32.totalorder %s78, 0
      %s81 = sadd.s32 %s80, 1
      %s82 = scalar_select %p79, %s80, %s81
      %p85 = pneg %p79
      %p86 = scmp.eq.s32.totalorder %s18, 1
      %p87 = por %p85, %p86
      %p88 = scmp.ne.s32.totalorder %s80, %s83
      %p89 = scmp.eq.s32.totalorder %s18, 0
      %p90 = por %p88, %p89
      %p91 = scmp.ne.s32.totalorder %s80, %s83
      %p92 = scmp.eq.s32.totalorder %s23, 1
      %p93 = por %p91, %p92
      %p94 = scmp.ne.s32.totalorder %s83, %s84
      %p95 = scmp.eq.s32.totalorder %s23, 0
      %p96 = por %p94, %p95
      %p97 = scmp.ne.s32.totalorder %s83, %s84
      %p98 = scmp.eq.s32.totalorder %s24, 1
      %p99 = por %p97, %p98
      %p101 = scmp.ne.s32.totalorder %s84, %s100
      %p102 = scmp.eq.s32.totalorder %s24, 0
      %p103 = por %p101, %p102
      %s104 = ssub.s32 %s18, %s25
      %p105 = scmp.eq.s32.totalorder %s104, 0
      %s107 = sadd.s32 %s106, 1
      %s108 = scalar_select %p105, %s106, %s107
      %p111 = pneg %p105
      %p112 = scmp.eq.s32.totalorder %s18, 1
      %p113 = por %p111, %p112
      %p114 = scmp.ne.s32.totalorder %s106, %s109
      %p115 = scmp.eq.s32.totalorder %s18, 0
      %p116 = por %p114, %p115
      %p117 = scmp.ne.s32.totalorder %s106, %s109
      %p118 = scmp.eq.s32.totalorder %s23, 1
      %p119 = por %p117, %p118
      %p120 = scmp.ne.s32.totalorder %s109, %s110
      %p121 = scmp.eq.s32.totalorder %s23, 0
      %p122 = por %p120, %p121
      %p123 = scmp.ne.s32.totalorder %s109, %s110
      %p124 = scmp.eq.s32.totalorder %s24, 1
      %p125 = por %p123, %p124
      %p127 = scmp.ne.s32.totalorder %s110, %s126
      %p128 = scmp.eq.s32.totalorder %s24, 0
      %p129 = por %p127, %p128
      %p130 = scmp.le.s32.totalorder 1, %s18
      %p131 = scmp.lt.s32.totalorder %s18, 3
      %p132 = pnand %p130, %p131
      %p133 = pneg %p132
      // Predicated region
      $region9: #{tpu_custom_call.1} parent=5 // pred_check
        _
      $region10: #{tpu_custom_call.1} parent=5 // pred_check_branch
        %135 = sbr.rel (%p132) target = $region12
      $region11: #{tpu_custom_call.1} parent=5 // pred_region
        %s136 = ssub.s32 %s18, 1
      $region12: #{tpu_custom_call.1} parent=5 // pred_fallthru
        _
      %p137 = scmp.lt.s32.totalorder %s18, 2
      // Predicated region
      $region13: #{tpu_custom_call.1} parent=5 // pred_check
        %p138 = pneg %p137
      $region14: #{tpu_custom_call.1} parent=5 // pred_check_branch
        %140 = sbr.rel (%p138) target = $region16
      $region15: #{tpu_custom_call.1} parent=5 // pred_region
        // Predicated region
        $region17: #{tpu_custom_call.1} parent=15 // pred_check
          %p141 = pneg %p38
        $region18: #{tpu_custom_call.1} parent=15 // pred_check_branch
          %143 = sbr.rel (%p141) target = $region20
        $region19: #{tpu_custom_call.1} parent=15 // pred_region
          %s144 = sand.u32 %s28, 1
          %s145 = scalar_lea.sflag [#allocation5], %s144
          %s146 = sand.u32 %s28, 1
          %s147 = smul.addr %s146, 96
          %s148 = scalar_lea.vmem [#allocation4], %s147
          %s149 = smul.u32 2, %s18
          %151 = vsyncadd %s145, 0
          %s152 = smul.addr %s149, 6
          %s153 = smul.addr %s152, 8
          %s154 = scalar_lea.hbm %s0, %s153
          %s155 = sshll.u32 %s154, 4
          %s156 = int_to_ptr.hbm [resolvable:$true] %s155
          %s157 = sshll.u32 %s148, 4
          %s158 = int_to_ptr.vmem [resolvable:$true] %s157
          %163 = dma.hbm_to_vmem [thread:$0]  %s156, 1536, %s158, %s145, 128, 128, 8
        $region20: #{tpu_custom_call.1} parent=15 // pred_fallthru
          _
        // Predicated region
        $region21: #{tpu_custom_call.1} parent=15 // pred_check
          %p164 = pneg %p64
        $region22: #{tpu_custom_call.1} parent=15 // pred_check_branch
          %166 = sbr.rel (%p164) target = $region24
        $region23: #{tpu_custom_call.1} parent=15 // pred_region
          %s167 = sand.u32 %s18, 1
          %s168 = scalar_lea.sflag [#allocation8], %s167
          %s169 = sand.u32 %s54, 1
          %s170 = smul.addr %s169, 96
          %s171 = scalar_lea.vmem [#allocation7], %s170
          %s172 = smul.u32 2, %s18
          %174 = vsyncadd %s168, 0
          %s175 = smul.addr %s172, 6
          %s176 = smul.addr %s175, 8
          %s177 = scalar_lea.hbm %s1, %s176
          %s178 = sshll.u32 %s177, 4
          %s179 = int_to_ptr.hbm [resolvable:$true] %s178
          %s180 = sshll.u32 %s171, 4
          %s181 = int_to_ptr.vmem [resolvable:$true] %s180
          %186 = dma.hbm_to_vmem [thread:$0]  %s179, 1536, %s181, %s168, 128, 128, 8
        $region24: #{tpu_custom_call.1} parent=15 // pred_fallthru
          _
        // Predicated region
        $region25: #{tpu_custom_call.1} parent=15 // pred_check
          %p187 = pneg %p90
        $region26: #{tpu_custom_call.1} parent=15 // pred_check_branch
          %189 = sbr.rel (%p187) target = $region28
        $region27: #{tpu_custom_call.1} parent=15 // pred_region
          %s190 = sand.u32 %s18, 1
          %s191 = scalar_lea.sflag [#allocation8], %s190
          %s192 = sand.u32 %s80, 1
          %s193 = smul.addr %s192, 96
          %s194 = scalar_lea.vmem [#allocation9], %s193
          %s195 = smul.u32 2, %s18
          %197 = vsyncadd %s191, 0
          %s198 = smul.addr %s195, 6
          %s199 = smul.addr %s198, 8
          %s200 = scalar_lea.hbm %s2, %s199
          %s201 = sshll.u32 %s200, 4
          %s202 = int_to_ptr.hbm [resolvable:$true] %s201
          %s203 = sshll.u32 %s194, 4
          %s204 = int_to_ptr.vmem [resolvable:$true] %s203
          %209 = dma.hbm_to_vmem [thread:$0]  %s202, 1536, %s204, %s191, 128, 128, 8
        $region28: #{tpu_custom_call.1} parent=15 // pred_fallthru
          _
      $region16: #{tpu_custom_call.1} parent=5 // pred_fallthru
        _
      %p210 = scmp.le.s32.totalorder 1, %s18
      %p211 = scmp.lt.s32.totalorder %s18, 3
      %p212 = pnand %p210, %p211
      %p213 = pneg %p212
      // Predicated region
      $region29: #{tpu_custom_call.1} parent=5 // pred_check
        _
      $region30: #{tpu_custom_call.1} parent=5 // pred_check_branch
        %215 = sbr.rel (%p212) target = $region32
      $region31: #{tpu_custom_call.1} parent=5 // pred_region
        %s216 = ssub.s32 %s18, 1
        %s217 = sand.u32 %s31, 1
        %s218 = scalar_lea.sflag [#allocation5], %s217
        %s219 = sand.u32 %s31, 1
        %s220 = smul.addr %s219, 96
        %s221 = scalar_lea.vmem [#allocation4], %s220
        // Predicated region
        $region33: #{tpu_custom_call.1} parent=31 // pred_check
          %p222 = pneg %p44
        $region34: #{tpu_custom_call.1} parent=31 // pred_check_branch
          %224 = sbr.rel (%p222) target = $region36
        $region35: #{tpu_custom_call.1} parent=31 // pred_region
          %226 = dma.done %s218, 1536
        $region36: #{tpu_custom_call.1} parent=31 // pred_fallthru
          _
        %s227 = sand.u32 %s23, 1
        %s228 = scalar_lea.sflag [#allocation8], %s227
        %s229 = sand.u32 %s57, 1
        %s230 = smul.addr %s229, 96
        %s231 = scalar_lea.vmem [#allocation7], %s230
        // Predicated region
        $region37: #{tpu_custom_call.1} parent=31 // pred_check
          %p232 = pneg %p70
        $region38: #{tpu_custom_call.1} parent=31 // pred_check_branch
          %234 = sbr.rel (%p232) target = $region40
        $region39: #{tpu_custom_call.1} parent=31 // pred_region
          %236 = dma.done %s228, 1536
        $region40: #{tpu_custom_call.1} parent=31 // pred_fallthru
          _
        %s237 = sand.u32 %s23, 1
        %s238 = scalar_lea.sflag [#allocation8], %s237
        %s239 = sand.u32 %s83, 1
        %s240 = smul.addr %s239, 96
        %s241 = scalar_lea.vmem [#allocation9], %s240
        // Predicated region
        $region41: #{tpu_custom_call.1} parent=31 // pred_check
          %p242 = pneg %p96
        $region42: #{tpu_custom_call.1} parent=31 // pred_check_branch
          %244 = sbr.rel (%p242) target = $region44
        $region43: #{tpu_custom_call.1} parent=31 // pred_region
          %246 = dma.done %s238, 1536
        $region44: #{tpu_custom_call.1} parent=31 // pred_fallthru
          _
        %s247 = sand.u32 %s31, 1
        %s248 = scalar_lea.sflag [#allocation5], %s247
        %s249 = sand.u32 %s31, 1
        %s250 = smul.addr %s249, 96
        %s251 = scalar_lea.vmem [#allocation4], %s250
        %p252 = pneg %p44
        %p253 = pneg %p41
        %s254 = sand.u32 %s23, 1
        %s255 = scalar_lea.sflag [#allocation8], %s254
        %s256 = sand.u32 %s57, 1
        %s257 = smul.addr %s256, 96
        %s258 = scalar_lea.vmem [#allocation7], %s257
        %p259 = pneg %p70
        %p260 = pneg %p67
        %s261 = sand.u32 %s23, 1
        %s262 = scalar_lea.sflag [#allocation8], %s261
        %s263 = sand.u32 %s83, 1
        %s264 = smul.addr %s263, 96
        %s265 = scalar_lea.vmem [#allocation9], %s264
        %p266 = pneg %p96
        %p267 = pneg %p93
        %p268 = pneg %p122
        %p269 = pneg %p119
        %s270 = sand.u32 %s109, 1
        %s271 = scalar_lea.sflag [#allocation6], %s270
        %s272 = sand.u32 %s109, 1
        %s273 = scalar_lea.vmem [#allocation10], %s272
        %s274 = smul.u32 2, %s23
        %s275 = smul.u32 2, %s23
        %s276 = smul.u32 2, %s23
        %v277 = vlaneseq
        %v278 = vand.u32 %v277, 127
        %v279 = vlaneseq
        %v280 = vshrl.u32 %v279, 7
        %v281 = vmul.u32 %v280, 11
        %vm282 = vcmp.ge.s32.totalorder %v278, %v281
        %v283 = vadd.s32 %v280, 1
        %v284 = vmul.u32 %v283, 11
        %vm285 = vcmp.lt.s32.totalorder %v278, %v284
        %vm286 = vmand %vm282, %vm285
        %v287 = vsel %vm286, 0.09090909, 0.0
        %v288 = vadd.s32 %v280, 8
        %v289 = vadd.s32 %v280, 16
        %v290 = vadd.s32 %v280, 24
        %v291 = vadd.s32 %v280, 32
        %v292 = vadd.s32 %v280, 40
        %v293 = vadd.s32 %v280, 48
        %v294 = vadd.s32 %v280, 56
        %v295 = vadd.s32 %v280, 64
        %v296 = vadd.s32 %v280, 72
        %v297 = vadd.s32 %v280, 80
        %v298 = vadd.s32 %v280, 88
        %v299 = vadd.s32 %v280, 96
        %v300 = vadd.s32 %v280, 104
        %v301 = vadd.s32 %v280, 112
        %v302 = vadd.s32 %v280, 120
        %v303 = vmul.u32 %v278, 11
        %vm304 = vcmp.ge.s32.totalorder %v280, %v303
        %vm305 = vcmp.ge.s32.totalorder %v288, %v303
        %vm306 = vcmp.ge.s32.totalorder %v289, %v303
        %vm307 = vcmp.ge.s32.totalorder %v290, %v303
        %vm308 = vcmp.ge.s32.totalorder %v291, %v303
        %vm309 = vcmp.ge.s32.totalorder %v292, %v303
        %vm310 = vcmp.ge.s32.totalorder %v293, %v303
        %vm311 = vcmp.ge.s32.totalorder %v294, %v303
        %vm312 = vcmp.ge.s32.totalorder %v295, %v303
        %vm313 = vcmp.ge.s32.totalorder %v296, %v303
        %vm314 = vcmp.ge.s32.totalorder %v297, %v303
        %vm315 = vcmp.ge.s32.totalorder %v298, %v303
        %vm316 = vcmp.ge.s32.totalorder %v299, %v303
        %vm317 = vcmp.ge.s32.totalorder %v300, %v303
        %vm318 = vcmp.ge.s32.totalorder %v301, %v303
        %vm319 = vcmp.ge.s32.totalorder %v302, %v303
        %v320 = vadd.s32 %v278, 1
        %v321 = vmul.u32 %v320, 11
        %vm322 = vcmp.lt.s32.totalorder %v280, %v321
        %vm323 = vcmp.lt.s32.totalorder %v288, %v321
        %vm324 = vcmp.lt.s32.totalorder %v289, %v321
        %vm325 = vcmp.lt.s32.totalorder %v290, %v321
        %vm326 = vcmp.lt.s32.totalorder %v291, %v321
        %vm327 = vcmp.lt.s32.totalorder %v292, %v321
        %vm328 = vcmp.lt.s32.totalorder %v293, %v321
        %vm329 = vcmp.lt.s32.totalorder %v294, %v321
        %vm330 = vcmp.lt.s32.totalorder %v295, %v321
        %vm331 = vcmp.lt.s32.totalorder %v296, %v321
        %vm332 = vcmp.lt.s32.totalorder %v297, %v321
        %vm333 = vcmp.lt.s32.totalorder %v298, %v321
        %vm334 = vcmp.lt.s32.totalorder %v299, %v321
        %vm335 = vcmp.lt.s32.totalorder %v300, %v321
        %vm336 = vcmp.lt.s32.totalorder %v301, %v321
        %vm337 = vcmp.lt.s32.totalorder %v302, %v321
        %vm338 = vmand %vm304, %vm322
        %vm339 = vmand %vm305, %vm323
        %vm340 = vmand %vm306, %vm324
        %vm341 = vmand %vm307, %vm325
        %vm342 = vmand %vm308, %vm326
        %vm343 = vmand %vm309, %vm327
        %vm344 = vmand %vm310, %vm328
        %vm345 = vmand %vm311, %vm329
        %vm346 = vmand %vm312, %vm330
        %vm347 = vmand %vm313, %vm331
        %vm348 = vmand %vm314, %vm332
        %vm349 = vmand %vm315, %vm333
        %vm350 = vmand %vm316, %vm334
        %vm351 = vmand %vm317, %vm335
        %vm352 = vmand %vm318, %vm336
        %vm353 = vmand %vm319, %vm337
        %v354 = vsel %vm338, 0.09090909, 0.0
        %v355 = vsel %vm339, 0.09090909, 0.0
        %v356 = vsel %vm340, 0.09090909, 0.0
        %v357 = vsel %vm341, 0.09090909, 0.0
        %v358 = vsel %vm342, 0.09090909, 0.0
        %v359 = vsel %vm343, 0.09090909, 0.0
        %v360 = vsel %vm344, 0.09090909, 0.0
        %v361 = vsel %vm345, 0.09090909, 0.0
        %v362 = vsel %vm346, 0.09090909, 0.0
        %v363 = vsel %vm347, 0.09090909, 0.0
        %v364 = vsel %vm348, 0.09090909, 0.0
        %v365 = vsel %vm349, 0.09090909, 0.0
        %v366 = vsel %vm350, 0.09090909, 0.0
        %v367 = vsel %vm351, 0.09090909, 0.0
        %v368 = vsel %vm352, 0.09090909, 0.0
        %v369 = vsel %vm353, 0.09090909, 0.0
        %v370 = vld [vmem:[%s221] sm:$0xff]
        %v371 = vld [vmem:[%s221 + $0x8] sm:$0xff]
        %v372 = vld [vmem:[%s221 + $0x10] sm:$0xff]
        %v373 = vld [vmem:[%s221 + $0x18] sm:$0xff]
        %v374 = vld [vmem:[%s221 + $0x20] sm:$0xff]
        %v375 = vld [vmem:[%s221 + $0x28] sm:$0xff]
        %v376 = vld [vmem:[%s231] sm:$0xff]
        %v377 = vld [vmem:[%s231 + $0x8] sm:$0xff]
        %v378 = vld [vmem:[%s231 + $0x10] sm:$0xff]
        %v379 = vld [vmem:[%s231 + $0x18] sm:$0xff]
        %v380 = vld [vmem:[%s231 + $0x20] sm:$0xff]
        %v381 = vld [vmem:[%s231 + $0x28] sm:$0xff]
        %v382 = vld [vmem:[%s241] sm:$0xff]
        %v383 = vld [vmem:[%s241 + $0x8] sm:$0xff]
        %v384 = vld [vmem:[%s241 + $0x10] sm:$0xff]
        %v385 = vld [vmem:[%s241 + $0x18] sm:$0xff]
        %v386 = vld [vmem:[%s241 + $0x20] sm:$0xff]
        %v387 = vld [vmem:[%s241 + $0x28] sm:$0xff]
        %388 = vst [vmem:[#allocation2] sm:$0xff] %v370
        %389 = vst [vmem:[#allocation2 + $0x80] sm:$0xff] %v371
        %390 = vst [vmem:[#allocation2 + $0x100] sm:$0xff] %v372
        %391 = vst [vmem:[#allocation2 + $0x180] sm:$0xff] %v373
        %392 = vst [vmem:[#allocation2 + $0x200] sm:$0xff] %v374
        %393 = vst [vmem:[#allocation2 + $0x280] sm:$0xff] %v375
        %394 = vst [vmem:[#allocation2 + $0x10] sm:$0xff] %v376
        %395 = vst [vmem:[#allocation2 + $0x90] sm:$0xff] %v377
        %396 = vst [vmem:[#allocation2 + $0x110] sm:$0xff] %v378
        %397 = vst [vmem:[#allocation2 + $0x190] sm:$0xff] %v379
        %398 = vst [vmem:[#allocation2 + $0x210] sm:$0xff] %v380
        %399 = vst [vmem:[#allocation2 + $0x290] sm:$0xff] %v381
        %400 = vst [vmem:[#allocation2 + $0x20] sm:$0xff] %v382
        %401 = vst [vmem:[#allocation2 + $0xa0] sm:$0xff] %v383
        %402 = vst [vmem:[#allocation2 + $0x120] sm:$0xff] %v384
        %403 = vst [vmem:[#allocation2 + $0x1a0] sm:$0xff] %v385
        %404 = vst [vmem:[#allocation2 + $0x220] sm:$0xff] %v386
        %405 = vst [vmem:[#allocation2 + $0x2a0] sm:$0xff] %v387
        %v406 = vmul.f32 %v370, %v370
        %v407 = vmul.f32 %v371, %v371
        %v408 = vmul.f32 %v372, %v372
        %v409 = vmul.f32 %v373, %v373
        %v410 = vmul.f32 %v374, %v374
        %v411 = vmul.f32 %v375, %v375
        %412 = vst [vmem:[#allocation2 + $0x30] sm:$0xff] %v406
        %413 = vst [vmem:[#allocation2 + $0xb0] sm:$0xff] %v407
        %414 = vst [vmem:[#allocation2 + $0x130] sm:$0xff] %v408
        %415 = vst [vmem:[#allocation2 + $0x1b0] sm:$0xff] %v409
        %416 = vst [vmem:[#allocation2 + $0x230] sm:$0xff] %v410
        %417 = vst [vmem:[#allocation2 + $0x2b0] sm:$0xff] %v411
        %v418 = vmul.f32 %v376, %v376
        %v419 = vmul.f32 %v377, %v377
        %v420 = vmul.f32 %v378, %v378
        %v421 = vmul.f32 %v379, %v379
        %v422 = vmul.f32 %v380, %v380
        %v423 = vmul.f32 %v381, %v381
        %424 = vst [vmem:[#allocation2 + $0x40] sm:$0xff] %v418
        %425 = vst [vmem:[#allocation2 + $0xc0] sm:$0xff] %v419
        %426 = vst [vmem:[#allocation2 + $0x140] sm:$0xff] %v420
        %427 = vst [vmem:[#allocation2 + $0x1c0] sm:$0xff] %v421
        %428 = vst [vmem:[#allocation2 + $0x240] sm:$0xff] %v422
        %429 = vst [vmem:[#allocation2 + $0x2c0] sm:$0xff] %v423
        %v430 = vmul.f32 %v382, %v382
        %v431 = vmul.f32 %v383, %v383
        %v432 = vmul.f32 %v384, %v384
        %v433 = vmul.f32 %v385, %v385
        %v434 = vmul.f32 %v386, %v386
        %v435 = vmul.f32 %v387, %v387
        %436 = vst [vmem:[#allocation2 + $0x50] sm:$0xff] %v430
        %437 = vst [vmem:[#allocation2 + $0xd0] sm:$0xff] %v431
        %438 = vst [vmem:[#allocation2 + $0x150] sm:$0xff] %v432
        %439 = vst [vmem:[#allocation2 + $0x1d0] sm:$0xff] %v433
        %440 = vst [vmem:[#allocation2 + $0x250] sm:$0xff] %v434
        %441 = vst [vmem:[#allocation2 + $0x2d0] sm:$0xff] %v435
        %v442 = vmul.f32 %v370, %v382
        %v443 = vmul.f32 %v371, %v383
        %v444 = vmul.f32 %v372, %v384
        %v445 = vmul.f32 %v373, %v385
        %v446 = vmul.f32 %v374, %v386
        %v447 = vmul.f32 %v375, %v387
        %448 = vst [vmem:[#allocation2 + $0x60] sm:$0xff] %v442
        %449 = vst [vmem:[#allocation2 + $0xe0] sm:$0xff] %v443
        %450 = vst [vmem:[#allocation2 + $0x160] sm:$0xff] %v444
        %451 = vst [vmem:[#allocation2 + $0x1e0] sm:$0xff] %v445
        %452 = vst [vmem:[#allocation2 + $0x260] sm:$0xff] %v446
        %453 = vst [vmem:[#allocation2 + $0x2e0] sm:$0xff] %v447
        %v454 = vmul.f32 %v376, %v382
        %v455 = vmul.f32 %v377, %v383
        %v456 = vmul.f32 %v378, %v384
        %v457 = vmul.f32 %v379, %v385
        %v458 = vmul.f32 %v380, %v386
        %v459 = vmul.f32 %v381, %v387
        %460 = vst [vmem:[#allocation2 + $0x70] sm:$0xff] %v454
        %461 = vst [vmem:[#allocation2 + $0xf0] sm:$0xff] %v455
        %462 = vst [vmem:[#allocation2 + $0x170] sm:$0xff] %v456
        %463 = vst [vmem:[#allocation2 + $0x1f0] sm:$0xff] %v457
        %464 = vst [vmem:[#allocation2 + $0x270] sm:$0xff] %v458
        %465 = vst [vmem:[#allocation2 + $0x2f0] sm:$0xff] %v459
        %s466 = scalar_lea.vmem %s221, 48 [#allocation4]
        %v467 = vld [vmem:[%s466] sm:$0xff]
        %v468 = vld [vmem:[%s466 + $0x8] sm:$0xff]
        %v469 = vld [vmem:[%s466 + $0x10] sm:$0xff]
        %v470 = vld [vmem:[%s466 + $0x18] sm:$0xff]
        %v471 = vld [vmem:[%s466 + $0x20] sm:$0xff]
        %v472 = vld [vmem:[%s466 + $0x28] sm:$0xff]
        %s473 = scalar_lea.vmem %s231, 48 [#allocation7]
        %v474 = vld [vmem:[%s473] sm:$0xff]
        %v475 = vld [vmem:[%s473 + $0x8] sm:$0xff]
        %v476 = vld [vmem:[%s473 + $0x10] sm:$0xff]
        %v477 = vld [vmem:[%s473 + $0x18] sm:$0xff]
        %v478 = vld [vmem:[%s473 + $0x20] sm:$0xff]
        %v479 = vld [vmem:[%s473 + $0x28] sm:$0xff]
        %s480 = scalar_lea.vmem %s241, 48 [#allocation9]
        %v481 = vld [vmem:[%s480] sm:$0xff]
        %v482 = vld [vmem:[%s480 + $0x8] sm:$0xff]
        %v483 = vld [vmem:[%s480 + $0x10] sm:$0xff]
        %v484 = vld [vmem:[%s480 + $0x18] sm:$0xff]
        %v485 = vld [vmem:[%s480 + $0x20] sm:$0xff]
        %v486 = vld [vmem:[%s480 + $0x28] sm:$0xff]
        %487 = vst [vmem:[#allocation2 + $0x8] sm:$0xff] %v467
        %488 = vst [vmem:[#allocation2 + $0x88] sm:$0xff] %v468
        %489 = vst [vmem:[#allocation2 + $0x108] sm:$0xff] %v469
        %490 = vst [vmem:[#allocation2 + $0x188] sm:$0xff] %v470
        %491 = vst [vmem:[#allocation2 + $0x208] sm:$0xff] %v471
        %492 = vst [vmem:[#allocation2 + $0x288] sm:$0xff] %v472
        %493 = vst [vmem:[#allocation2 + $0x18] sm:$0xff] %v474
        %494 = vst [vmem:[#allocation2 + $0x98] sm:$0xff] %v475
        %495 = vst [vmem:[#allocation2 + $0x118] sm:$0xff] %v476
        %496 = vst [vmem:[#allocation2 + $0x198] sm:$0xff] %v477
        %497 = vst [vmem:[#allocation2 + $0x218] sm:$0xff] %v478
        %498 = vst [vmem:[#allocation2 + $0x298] sm:$0xff] %v479
        %499 = vst [vmem:[#allocation2 + $0x28] sm:$0xff] %v481
        %500 = vst [vmem:[#allocation2 + $0xa8] sm:$0xff] %v482
        %501 = vst [vmem:[#allocation2 + $0x128] sm:$0xff] %v483
        %502 = vst [vmem:[#allocation2 + $0x1a8] sm:$0xff] %v484
        %503 = vst [vmem:[#allocation2 + $0x228] sm:$0xff] %v485
        %504 = vst [vmem:[#allocation2 + $0x2a8] sm:$0xff] %v486
        %v505 = vmul.f32 %v467, %v467
        %v506 = vmul.f32 %v468, %v468
        %v507 = vmul.f32 %v469, %v469
        %v508 = vmul.f32 %v470, %v470
        %v509 = vmul.f32 %v471, %v471
        %v510 = vmul.f32 %v472, %v472
        %511 = vst [vmem:[#allocation2 + $0x38] sm:$0xff] %v505
        %512 = vst [vmem:[#allocation2 + $0xb8] sm:$0xff] %v506
        %513 = vst [vmem:[#allocation2 + $0x138] sm:$0xff] %v507
        %514 = vst [vmem:[#allocation2 + $0x1b8] sm:$0xff] %v508
        %515 = vst [vmem:[#allocation2 + $0x238] sm:$0xff] %v509
        %516 = vst [vmem:[#allocation2 + $0x2b8] sm:$0xff] %v510
        %v517 = vmul.f32 %v474, %v474
        %v518 = vmul.f32 %v475, %v475
        %v519 = vmul.f32 %v476, %v476
        %v520 = vmul.f32 %v477, %v477
        %v521 = vmul.f32 %v478, %v478
        %v522 = vmul.f32 %v479, %v479
        %523 = vst [vmem:[#allocation2 + $0x48] sm:$0xff] %v517
        %524 = vst [vmem:[#allocation2 + $0xc8] sm:$0xff] %v518
        %525 = vst [vmem:[#allocation2 + $0x148] sm:$0xff] %v519
        %526 = vst [vmem:[#allocation2 + $0x1c8] sm:$0xff] %v520
        %527 = vst [vmem:[#allocation2 + $0x248] sm:$0xff] %v521
        %528 = vst [vmem:[#allocation2 + $0x2c8] sm:$0xff] %v522
        %v529 = vmul.f32 %v481, %v481
        %v530 = vmul.f32 %v482, %v482
        %v531 = vmul.f32 %v483, %v483
        %v532 = vmul.f32 %v484, %v484
        %v533 = vmul.f32 %v485, %v485
        %v534 = vmul.f32 %v486, %v486
        %535 = vst [vmem:[#allocation2 + $0x58] sm:$0xff] %v529
        %536 = vst [vmem:[#allocation2 + $0xd8] sm:$0xff] %v530
        %537 = vst [vmem:[#allocation2 + $0x158] sm:$0xff] %v531
        %538 = vst [vmem:[#allocation2 + $0x1d8] sm:$0xff] %v532
        %539 = vst [vmem:[#allocation2 + $0x258] sm:$0xff] %v533
        %540 = vst [vmem:[#allocation2 + $0x2d8] sm:$0xff] %v534
        %v541 = vmul.f32 %v467, %v481
        %v542 = vmul.f32 %v468, %v482
        %v543 = vmul.f32 %v469, %v483
        %v544 = vmul.f32 %v470, %v484
        %v545 = vmul.f32 %v471, %v485
        %v546 = vmul.f32 %v472, %v486
        %547 = vst [vmem:[#allocation2 + $0x68] sm:$0xff] %v541
        %548 = vst [vmem:[#allocation2 + $0xe8] sm:$0xff] %v542
        %549 = vst [vmem:[#allocation2 + $0x168] sm:$0xff] %v543
        %550 = vst [vmem:[#allocation2 + $0x1e8] sm:$0xff] %v544
        %551 = vst [vmem:[#allocation2 + $0x268] sm:$0xff] %v545
        %552 = vst [vmem:[#allocation2 + $0x2e8] sm:$0xff] %v546
        %v553 = vmul.f32 %v474, %v481
        %v554 = vmul.f32 %v475, %v482
        %v555 = vmul.f32 %v476, %v483
        %v556 = vmul.f32 %v477, %v484
        %v557 = vmul.f32 %v478, %v485
        %v558 = vmul.f32 %v479, %v486
        %559 = vst [vmem:[#allocation2 + $0x78] sm:$0xff] %v553
        %560 = vst [vmem:[#allocation2 + $0xf8] sm:$0xff] %v554
        %561 = vst [vmem:[#allocation2 + $0x178] sm:$0xff] %v555
        %562 = vst [vmem:[#allocation2 + $0x1f8] sm:$0xff] %v556
        %563 = vst [vmem:[#allocation2 + $0x278] sm:$0xff] %v557
        %564 = vst [vmem:[#allocation2 + $0x2f8] sm:$0xff] %v558
        %v565 = vld [vmem:[#allocation2] sm:$0xff]
        %v566 = vld [vmem:[#allocation2 + $0x8] sm:$0xff]
        %v567 = vld [vmem:[#allocation2 + $0x10] sm:$0xff]
        %v568 = vld [vmem:[#allocation2 + $0x18] sm:$0xff]
        %v569 = vld [vmem:[#allocation2 + $0x20] sm:$0xff]
        %v570 = vld [vmem:[#allocation2 + $0x28] sm:$0xff]
        %v571 = vld [vmem:[#allocation2 + $0x30] sm:$0xff]
        %v572 = vld [vmem:[#allocation2 + $0x38] sm:$0xff]
        %v573 = vld [vmem:[#allocation2 + $0x40] sm:$0xff]
        %v574 = vld [vmem:[#allocation2 + $0x48] sm:$0xff]
        %v575 = vld [vmem:[#allocation2 + $0x50] sm:$0xff]
        %v576 = vld [vmem:[#allocation2 + $0x58] sm:$0xff]
        %v577 = vld [vmem:[#allocation2 + $0x60] sm:$0xff]
        %v578 = vld [vmem:[#allocation2 + $0x68] sm:$0xff]
        %v579 = vld [vmem:[#allocation2 + $0x70] sm:$0xff]
        %v580 = vld [vmem:[#allocation2 + $0x78] sm:$0xff]
        %v581 = vld [vmem:[#allocation2 + $0x80] sm:$0xff]
        %v582 = vld [vmem:[#allocation2 + $0x88] sm:$0xff]
        %v583 = vld [vmem:[#allocation2 + $0x90] sm:$0xff]
        %v584 = vld [vmem:[#allocation2 + $0x98] sm:$0xff]
        %v585 = vld [vmem:[#allocation2 + $0xa0] sm:$0xff]
        %v586 = vld [vmem:[#allocation2 + $0xa8] sm:$0xff]
        %v587 = vld [vmem:[#allocation2 + $0xb0] sm:$0xff]
        %v588 = vld [vmem:[#allocation2 + $0xb8] sm:$0xff]
        %v589 = vld [vmem:[#allocation2 + $0xc0] sm:$0xff]
        %v590 = vld [vmem:[#allocation2 + $0xc8] sm:$0xff]
        %v591 = vld [vmem:[#allocation2 + $0xd0] sm:$0xff]
        %v592 = vld [vmem:[#allocation2 + $0xd8] sm:$0xff]
        %v593 = vld [vmem:[#allocation2 + $0xe0] sm:$0xff]
        %v594 = vld [vmem:[#allocation2 + $0xe8] sm:$0xff]
        %v595 = vld [vmem:[#allocation2 + $0xf0] sm:$0xff]
        %v596 = vld [vmem:[#allocation2 + $0xf8] sm:$0xff]
        %v597 = vld [vmem:[#allocation2 + $0x100] sm:$0xff]
        %v598 = vld [vmem:[#allocation2 + $0x108] sm:$0xff]
        %v599 = vld [vmem:[#allocation2 + $0x110] sm:$0xff]
        %v600 = vld [vmem:[#allocation2 + $0x118] sm:$0xff]
        %v601 = vld [vmem:[#allocation2 + $0x120] sm:$0xff]
        %v602 = vld [vmem:[#allocation2 + $0x128] sm:$0xff]
        %v603 = vld [vmem:[#allocation2 + $0x130] sm:$0xff]
        %v604 = vld [vmem:[#allocation2 + $0x138] sm:$0xff]
        %v605 = vld [vmem:[#allocation2 + $0x140] sm:$0xff]
        %v606 = vld [vmem:[#allocation2 + $0x148] sm:$0xff]
        %v607 = vld [vmem:[#allocation2 + $0x150] sm:$0xff]
        %v608 = vld [vmem:[#allocation2 + $0x158] sm:$0xff]
        %v609 = vld [vmem:[#allocation2 + $0x160] sm:$0xff]
        %v610 = vld [vmem:[#allocation2 + $0x168] sm:$0xff]
        %v611 = vld [vmem:[#allocation2 + $0x170] sm:$0xff]
        %v612 = vld [vmem:[#allocation2 + $0x178] sm:$0xff]
        %v613 = vld [vmem:[#allocation2 + $0x180] sm:$0xff]
        %v614 = vld [vmem:[#allocation2 + $0x188] sm:$0xff]
        %v615 = vld [vmem:[#allocation2 + $0x190] sm:$0xff]
        %v616 = vld [vmem:[#allocation2 + $0x198] sm:$0xff]
        %v617 = vld [vmem:[#allocation2 + $0x1a0] sm:$0xff]
        %v618 = vld [vmem:[#allocation2 + $0x1a8] sm:$0xff]
        %v619 = vld [vmem:[#allocation2 + $0x1b0] sm:$0xff]
        %v620 = vld [vmem:[#allocation2 + $0x1b8] sm:$0xff]
        %v621 = vld [vmem:[#allocation2 + $0x1c0] sm:$0xff]
        %v622 = vld [vmem:[#allocation2 + $0x1c8] sm:$0xff]
        %v623 = vld [vmem:[#allocation2 + $0x1d0] sm:$0xff]
        %v624 = vld [vmem:[#allocation2 + $0x1d8] sm:$0xff]
        %v625 = vld [vmem:[#allocation2 + $0x1e0] sm:$0xff]
        %v626 = vld [vmem:[#allocation2 + $0x1e8] sm:$0xff]
        %v627 = vld [vmem:[#allocation2 + $0x1f0] sm:$0xff]
        %v628 = vld [vmem:[#allocation2 + $0x1f8] sm:$0xff]
        %v629 = vld [vmem:[#allocation2 + $0x200] sm:$0xff]
        %v630 = vld [vmem:[#allocation2 + $0x208] sm:$0xff]
        %v631 = vld [vmem:[#allocation2 + $0x210] sm:$0xff]
        %v632 = vld [vmem:[#allocation2 + $0x218] sm:$0xff]
        %v633 = vld [vmem:[#allocation2 + $0x220] sm:$0xff]
        %v634 = vld [vmem:[#allocation2 + $0x228] sm:$0xff]
        %v635 = vld [vmem:[#allocation2 + $0x230] sm:$0xff]
        %v636 = vld [vmem:[#allocation2 + $0x238] sm:$0xff]
        %v637 = vld [vmem:[#allocation2 + $0x240] sm:$0xff]
        %v638 = vld [vmem:[#allocation2 + $0x248] sm:$0xff]
        %v639 = vld [vmem:[#allocation2 + $0x250] sm:$0xff]
        %v640 = vld [vmem:[#allocation2 + $0x258] sm:$0xff]
        %v641 = vld [vmem:[#allocation2 + $0x260] sm:$0xff]
        %v642 = vld [vmem:[#allocation2 + $0x268] sm:$0xff]
        %v643 = vld [vmem:[#allocation2 + $0x270] sm:$0xff]
        %v644 = vld [vmem:[#allocation2 + $0x278] sm:$0xff]
        %v645 = vld [vmem:[#allocation2 + $0x280] sm:$0xff]
        %v646 = vld [vmem:[#allocation2 + $0x288] sm:$0xff]
        %v647 = vld [vmem:[#allocation2 + $0x290] sm:$0xff]
        %v648 = vld [vmem:[#allocation2 + $0x298] sm:$0xff]
        %v649 = vld [vmem:[#allocation2 + $0x2a0] sm:$0xff]
        %v650 = vld [vmem:[#allocation2 + $0x2a8] sm:$0xff]
        %v651 = vld [vmem:[#allocation2 + $0x2b0] sm:$0xff]
        %v652 = vld [vmem:[#allocation2 + $0x2b8] sm:$0xff]
        %v653 = vld [vmem:[#allocation2 + $0x2c0] sm:$0xff]
        %v654 = vld [vmem:[#allocation2 + $0x2c8] sm:$0xff]
        %v655 = vld [vmem:[#allocation2 + $0x2d0] sm:$0xff]
        %v656 = vld [vmem:[#allocation2 + $0x2d8] sm:$0xff]
        %v657 = vld [vmem:[#allocation2 + $0x2e0] sm:$0xff]
        %v658 = vld [vmem:[#allocation2 + $0x2e8] sm:$0xff]
        %v659 = vld [vmem:[#allocation2 + $0x2f0] sm:$0xff]
        %v660 = vld [vmem:[#allocation2 + $0x2f8] sm:$0xff]
        %vm661 = vcmask 392192
        %v663 = vsel %vm661, %v287, 0
        %665 = vmatpush.msra.mxu0 0.0
        %666 = vmatpush.msra.mxu0 0.0
        %667 = vmatpush.msra.mxu0 0.0
        %668 = vmatpush.msra.mxu0 0.0
        %669 = vmatpush.msra.mxu0 0.0
        %670 = vmatpush.msra.mxu0 0.0
        %671 = vmatpush.msra.mxu0 0.0
        %672 = vmatpush.msra.mxu0 0.0
        %673 = vmatpush.msra.mxu0 0.0
        %674 = vmatpush.msra.mxu0 0.0
        %675 = vmatpush.msra.mxu0 %v645
        %676 = vmatpush.msra.mxu0 %v629
        %677 = vmatpush.msra.mxu0 %v613
        %678 = vmatpush.msra.mxu0 %v597
        %679 = vmatpush.msra.mxu0 %v581
        %680 = vmatpush.msra.mxu0 %v565
        %681 = vmatmul.f32.gmra.mxu0 %v663
        %v682 = vpop.f32.mrf.mxu0
        %v683 = vadd.f32 0.0, %v682
        %684 = vdwg.mxu0
        %685 = vmatpush.msra.mxu0 0.0
        %686 = vmatpush.msra.mxu0 0.0
        %687 = vmatpush.msra.mxu0 0.0
        %688 = vmatpush.msra.mxu0 0.0
        %689 = vmatpush.msra.mxu0 0.0
        %690 = vmatpush.msra.mxu0 0.0
        %691 = vmatpush.msra.mxu0 0.0
        %692 = vmatpush.msra.mxu0 0.0
        %693 = vmatpush.msra.mxu0 0.0
        %694 = vmatpush.msra.mxu0 0.0
        %695 = vmatpush.msra.mxu0 %v646
        %696 = vmatpush.msra.mxu0 %v630
        %697 = vmatpush.msra.mxu0 %v614
        %698 = vmatpush.msra.mxu0 %v598
        %699 = vmatpush.msra.mxu0 %v582
        %700 = vmatpush.msra.mxu0 %v566
        %701 = vmatmul.f32.gmra.mxu0 %v663
        %v702 = vpop.f32.mrf.mxu0
        %v703 = vadd.f32 0.0, %v702
        %704 = vdwg.mxu0
        %705 = vmatpush.msra.mxu0 0.0
        %706 = vmatpush.msra.mxu0 0.0
        %707 = vmatpush.msra.mxu0 0.0
        %708 = vmatpush.msra.mxu0 0.0
        %709 = vmatpush.msra.mxu0 0.0
        %710 = vmatpush.msra.mxu0 0.0
        %711 = vmatpush.msra.mxu0 0.0
        %712 = vmatpush.msra.mxu0 0.0
        %713 = vmatpush.msra.mxu0 0.0
        %714 = vmatpush.msra.mxu0 0.0
        %715 = vmatpush.msra.mxu0 %v647
        %716 = vmatpush.msra.mxu0 %v631
        %717 = vmatpush.msra.mxu0 %v615
        %718 = vmatpush.msra.mxu0 %v599
        %719 = vmatpush.msra.mxu0 %v583
        %720 = vmatpush.msra.mxu0 %v567
        %721 = vmatmul.f32.gmra.mxu0 %v663
        %v722 = vpop.f32.mrf.mxu0
        %v723 = vadd.f32 0.0, %v722
        %724 = vdwg.mxu0
        %725 = vmatpush.msra.mxu0 0.0
        %726 = vmatpush.msra.mxu0 0.0
        %727 = vmatpush.msra.mxu0 0.0
        %728 = vmatpush.msra.mxu0 0.0
        %729 = vmatpush.msra.mxu0 0.0
        %730 = vmatpush.msra.mxu0 0.0
        %731 = vmatpush.msra.mxu0 0.0
        %732 = vmatpush.msra.mxu0 0.0
        %733 = vmatpush.msra.mxu0 0.0
        %734 = vmatpush.msra.mxu0 0.0
        %735 = vmatpush.msra.mxu0 %v648
        %736 = vmatpush.msra.mxu0 %v632
        %737 = vmatpush.msra.mxu0 %v616
        %738 = vmatpush.msra.mxu0 %v600
        %739 = vmatpush.msra.mxu0 %v584
        %740 = vmatpush.msra.mxu0 %v568
        %741 = vmatmul.f32.gmra.mxu0 %v663
        %v742 = vpop.f32.mrf.mxu0
        %v743 = vadd.f32 0.0, %v742
        %744 = vdwg.mxu0
        %745 = vmatpush.msra.mxu0 0.0
        %746 = vmatpush.msra.mxu0 0.0
        %747 = vmatpush.msra.mxu0 0.0
        %748 = vmatpush.msra.mxu0 0.0
        %749 = vmatpush.msra.mxu0 0.0
        %750 = vmatpush.msra.mxu0 0.0
        %751 = vmatpush.msra.mxu0 0.0
        %752 = vmatpush.msra.mxu0 0.0
        %753 = vmatpush.msra.mxu0 0.0
        %754 = vmatpush.msra.mxu0 0.0
        %755 = vmatpush.msra.mxu0 %v649
        %756 = vmatpush.msra.mxu0 %v633
        %757 = vmatpush.msra.mxu0 %v617
        %758 = vmatpush.msra.mxu0 %v601
        %759 = vmatpush.msra.mxu0 %v585
        %760 = vmatpush.msra.mxu0 %v569
        %761 = vmatmul.f32.gmra.mxu0 %v663
        %v762 = vpop.f32.mrf.mxu0
        %v763 = vadd.f32 0.0, %v762
        %764 = vdwg.mxu0
        %765 = vmatpush.msra.mxu0 0.0
        %766 = vmatpush.msra.mxu0 0.0
        %767 = vmatpush.msra.mxu0 0.0
        %768 = vmatpush.msra.mxu0 0.0
        %769 = vmatpush.msra.mxu0 0.0
        %770 = vmatpush.msra.mxu0 0.0
        %771 = vmatpush.msra.mxu0 0.0
        %772 = vmatpush.msra.mxu0 0.0
        %773 = vmatpush.msra.mxu0 0.0
        %774 = vmatpush.msra.mxu0 0.0
        %775 = vmatpush.msra.mxu0 %v650
        %776 = vmatpush.msra.mxu0 %v634
        %777 = vmatpush.msra.mxu0 %v618
        %778 = vmatpush.msra.mxu0 %v602
        %779 = vmatpush.msra.mxu0 %v586
        %780 = vmatpush.msra.mxu0 %v570
        %781 = vmatmul.f32.gmra.mxu0 %v663
        %v782 = vpop.f32.mrf.mxu0
        %v783 = vadd.f32 0.0, %v782
        %784 = vdwg.mxu0
        %785 = vmatpush.msra.mxu0 0.0
        %786 = vmatpush.msra.mxu0 0.0
        %787 = vmatpush.msra.mxu0 0.0
        %788 = vmatpush.msra.mxu0 0.0
        %789 = vmatpush.msra.mxu0 0.0
        %790 = vmatpush.msra.mxu0 0.0
        %791 = vmatpush.msra.mxu0 0.0
        %792 = vmatpush.msra.mxu0 0.0
        %793 = vmatpush.msra.mxu0 0.0
        %794 = vmatpush.msra.mxu0 0.0
        %795 = vmatpush.msra.mxu0 %v651
        %796 = vmatpush.msra.mxu0 %v635
        %797 = vmatpush.msra.mxu0 %v619
        %798 = vmatpush.msra.mxu0 %v603
        %799 = vmatpush.msra.mxu0 %v587
        %800 = vmatpush.msra.mxu0 %v571
        %801 = vmatmul.f32.gmra.mxu0 %v663
        %v802 = vpop.f32.mrf.mxu0
        %v803 = vadd.f32 0.0, %v802
        %804 = vdwg.mxu0
        %805 = vmatpush.msra.mxu0 0.0
        %806 = vmatpush.msra.mxu0 0.0
        %807 = vmatpush.msra.mxu0 0.0
        %808 = vmatpush.msra.mxu0 0.0
        %809 = vmatpush.msra.mxu0 0.0
        %810 = vmatpush.msra.mxu0 0.0
        %811 = vmatpush.msra.mxu0 0.0
        %812 = vmatpush.msra.mxu0 0.0
        %813 = vmatpush.msra.mxu0 0.0
        %814 = vmatpush.msra.mxu0 0.0
        %815 = vmatpush.msra.mxu0 %v652
        %816 = vmatpush.msra.mxu0 %v636
        %817 = vmatpush.msra.mxu0 %v620
        %818 = vmatpush.msra.mxu0 %v604
        %819 = vmatpush.msra.mxu0 %v588
        %820 = vmatpush.msra.mxu0 %v572
        %821 = vmatmul.f32.gmra.mxu0 %v663
        %v822 = vpop.f32.mrf.mxu0
        %v823 = vadd.f32 0.0, %v822
        %824 = vdwg.mxu0
        %825 = vmatpush.msra.mxu0 0.0
        %826 = vmatpush.msra.mxu0 0.0
        %827 = vmatpush.msra.mxu0 0.0
        %828 = vmatpush.msra.mxu0 0.0
        %829 = vmatpush.msra.mxu0 0.0
        %830 = vmatpush.msra.mxu0 0.0
        %831 = vmatpush.msra.mxu0 0.0
        %832 = vmatpush.msra.mxu0 0.0
        %833 = vmatpush.msra.mxu0 0.0
        %834 = vmatpush.msra.mxu0 0.0
        %835 = vmatpush.msra.mxu0 %v653
        %836 = vmatpush.msra.mxu0 %v637
        %837 = vmatpush.msra.mxu0 %v621
        %838 = vmatpush.msra.mxu0 %v605
        %839 = vmatpush.msra.mxu0 %v589
        %840 = vmatpush.msra.mxu0 %v573
        %841 = vmatmul.f32.gmra.mxu0 %v663
        %v842 = vpop.f32.mrf.mxu0
        %v843 = vadd.f32 0.0, %v842
        %844 = vdwg.mxu0
        %845 = vmatpush.msra.mxu0 0.0
        %846 = vmatpush.msra.mxu0 0.0
        %847 = vmatpush.msra.mxu0 0.0
        %848 = vmatpush.msra.mxu0 0.0
        %849 = vmatpush.msra.mxu0 0.0
        %850 = vmatpush.msra.mxu0 0.0
        %851 = vmatpush.msra.mxu0 0.0
        %852 = vmatpush.msra.mxu0 0.0
        %853 = vmatpush.msra.mxu0 0.0
        %854 = vmatpush.msra.mxu0 0.0
        %855 = vmatpush.msra.mxu0 %v654
        %856 = vmatpush.msra.mxu0 %v638
        %857 = vmatpush.msra.mxu0 %v622
        %858 = vmatpush.msra.mxu0 %v606
        %859 = vmatpush.msra.mxu0 %v590
        %860 = vmatpush.msra.mxu0 %v574
        %861 = vmatmul.f32.gmra.mxu0 %v663
        %v862 = vpop.f32.mrf.mxu0
        %v863 = vadd.f32 0.0, %v862
        %864 = vdwg.mxu0
        %865 = vmatpush.msra.mxu0 0.0
        %866 = vmatpush.msra.mxu0 0.0
        %867 = vmatpush.msra.mxu0 0.0
        %868 = vmatpush.msra.mxu0 0.0
        %869 = vmatpush.msra.mxu0 0.0
        %870 = vmatpush.msra.mxu0 0.0
        %871 = vmatpush.msra.mxu0 0.0
        %872 = vmatpush.msra.mxu0 0.0
        %873 = vmatpush.msra.mxu0 0.0
        %874 = vmatpush.msra.mxu0 0.0
        %875 = vmatpush.msra.mxu0 %v655
        %876 = vmatpush.msra.mxu0 %v639
        %877 = vmatpush.msra.mxu0 %v623
        %878 = vmatpush.msra.mxu0 %v607
        %879 = vmatpush.msra.mxu0 %v591
        %880 = vmatpush.msra.mxu0 %v575
        %881 = vmatmul.f32.gmra.mxu0 %v663
        %v882 = vpop.f32.mrf.mxu0
        %v883 = vadd.f32 0.0, %v882
        %884 = vdwg.mxu0
        %885 = vmatpush.msra.mxu0 0.0
        %886 = vmatpush.msra.mxu0 0.0
        %887 = vmatpush.msra.mxu0 0.0
        %888 = vmatpush.msra.mxu0 0.0
        %889 = vmatpush.msra.mxu0 0.0
        %890 = vmatpush.msra.mxu0 0.0
        %891 = vmatpush.msra.mxu0 0.0
        %892 = vmatpush.msra.mxu0 0.0
        %893 = vmatpush.msra.mxu0 0.0
        %894 = vmatpush.msra.mxu0 0.0
        %895 = vmatpush.msra.mxu0 %v656
        %896 = vmatpush.msra.mxu0 %v640
        %897 = vmatpush.msra.mxu0 %v624
        %898 = vmatpush.msra.mxu0 %v608
        %899 = vmatpush.msra.mxu0 %v592
        %900 = vmatpush.msra.mxu0 %v576
        %901 = vmatmul.f32.gmra.mxu0 %v663
        %v902 = vpop.f32.mrf.mxu0
        %v903 = vadd.f32 0.0, %v902
        %904 = vdwg.mxu0
        %905 = vmatpush.msra.mxu0 0.0
        %906 = vmatpush.msra.mxu0 0.0
        %907 = vmatpush.msra.mxu0 0.0
        %908 = vmatpush.msra.mxu0 0.0
        %909 = vmatpush.msra.mxu0 0.0
        %910 = vmatpush.msra.mxu0 0.0
        %911 = vmatpush.msra.mxu0 0.0
        %912 = vmatpush.msra.mxu0 0.0
        %913 = vmatpush.msra.mxu0 0.0
        %914 = vmatpush.msra.mxu0 0.0
        %915 = vmatpush.msra.mxu0 %v657
        %916 = vmatpush.msra.mxu0 %v641
        %917 = vmatpush.msra.mxu0 %v625
        %918 = vmatpush.msra.mxu0 %v609
        %919 = vmatpush.msra.mxu0 %v593
        %920 = vmatpush.msra.mxu0 %v577
        %921 = vmatmul.f32.gmra.mxu0 %v663
        %v922 = vpop.f32.mrf.mxu0
        %v923 = vadd.f32 0.0, %v922
        %924 = vdwg.mxu0
        %925 = vmatpush.msra.mxu0 0.0
        %926 = vmatpush.msra.mxu0 0.0
        %927 = vmatpush.msra.mxu0 0.0
        %928 = vmatpush.msra.mxu0 0.0
        %929 = vmatpush.msra.mxu0 0.0
        %930 = vmatpush.msra.mxu0 0.0
        %931 = vmatpush.msra.mxu0 0.0
        %932 = vmatpush.msra.mxu0 0.0
        %933 = vmatpush.msra.mxu0 0.0
        %934 = vmatpush.msra.mxu0 0.0
        %935 = vmatpush.msra.mxu0 %v658
        %936 = vmatpush.msra.mxu0 %v642
        %937 = vmatpush.msra.mxu0 %v626
        %938 = vmatpush.msra.mxu0 %v610
        %939 = vmatpush.msra.mxu0 %v594
        %940 = vmatpush.msra.mxu0 %v578
        %941 = vmatmul.f32.gmra.mxu0 %v663
        %v942 = vpop.f32.mrf.mxu0
        %v943 = vadd.f32 0.0, %v942
        %944 = vdwg.mxu0
        %945 = vmatpush.msra.mxu0 0.0
        %946 = vmatpush.msra.mxu0 0.0
        %947 = vmatpush.msra.mxu0 0.0
        %948 = vmatpush.msra.mxu0 0.0
        %949 = vmatpush.msra.mxu0 0.0
        %950 = vmatpush.msra.mxu0 0.0
        %951 = vmatpush.msra.mxu0 0.0
        %952 = vmatpush.msra.mxu0 0.0
        %953 = vmatpush.msra.mxu0 0.0
        %954 = vmatpush.msra.mxu0 0.0
        %955 = vmatpush.msra.mxu0 %v659
        %956 = vmatpush.msra.mxu0 %v643
        %957 = vmatpush.msra.mxu0 %v627
        %958 = vmatpush.msra.mxu0 %v611
        %959 = vmatpush.msra.mxu0 %v595
        %960 = vmatpush.msra.mxu0 %v579
        %961 = vmatmul.f32.gmra.mxu0 %v663
        %v962 = vpop.f32.mrf.mxu0
        %v963 = vadd.f32 0.0, %v962
        %964 = vdwg.mxu0
        %965 = vmatpush.msra.mxu0 0.0
        %966 = vmatpush.msra.mxu0 0.0
        %967 = vmatpush.msra.mxu0 0.0
        %968 = vmatpush.msra.mxu0 0.0
        %969 = vmatpush.msra.mxu0 0.0
        %970 = vmatpush.msra.mxu0 0.0
        %971 = vmatpush.msra.mxu0 0.0
        %972 = vmatpush.msra.mxu0 0.0
        %973 = vmatpush.msra.mxu0 0.0
        %974 = vmatpush.msra.mxu0 0.0
        %975 = vmatpush.msra.mxu0 %v660
        %976 = vmatpush.msra.mxu0 %v644
        %977 = vmatpush.msra.mxu0 %v628
        %978 = vmatpush.msra.mxu0 %v612
        %979 = vmatpush.msra.mxu0 %v596
        %980 = vmatpush.msra.mxu0 %v580
        %981 = vmatmul.f32.gmra.mxu0 %v663
        %v982 = vpop.f32.mrf.mxu0
        %v983 = vadd.f32 0.0, %v982
        %984 = vdwg.mxu0
        %985 = vst [vmem:[#allocation3] sm:$0xf] %v683
        %986 = vst [vmem:[#allocation3 + $0x4] sm:$0xf] %v703
        %987 = vst [vmem:[#allocation3 + $0x8] sm:$0xf] %v723
        %988 = vst [vmem:[#allocation3 + $0xc] sm:$0xf] %v743
        %989 = vst [vmem:[#allocation3 + $0x10] sm:$0xf] %v763
        %990 = vst [vmem:[#allocation3 + $0x14] sm:$0xf] %v783
        %991 = vst [vmem:[#allocation3 + $0x18] sm:$0xf] %v803
        %992 = vst [vmem:[#allocation3 + $0x1c] sm:$0xf] %v823
        %993 = vst [vmem:[#allocation3 + $0x20] sm:$0xf] %v843
        %994 = vst [vmem:[#allocation3 + $0x24] sm:$0xf] %v863
        %995 = vst [vmem:[#allocation3 + $0x28] sm:$0xf] %v883
        %996 = vst [vmem:[#allocation3 + $0x2c] sm:$0xf] %v903
        %997 = vst [vmem:[#allocation3 + $0x30] sm:$0xf] %v923
        %998 = vst [vmem:[#allocation3 + $0x34] sm:$0xf] %v943
        %999 = vst [vmem:[#allocation3 + $0x38] sm:$0xf] %v963
        %1000 = vst [vmem:[#allocation3 + $0x3c] sm:$0xf] %v983
        %v1001 = vld [vmem:[#allocation3] sm:$0xff]
        %v1002 = vld [vmem:[#allocation3 + $0x8] sm:$0xff]
        %v1003 = vld [vmem:[#allocation3 + $0x10] sm:$0xff]
        %v1004 = vld [vmem:[#allocation3 + $0x18] sm:$0xff]
        %v1005 = vld [vmem:[#allocation3 + $0x20] sm:$0xff]
        %v1006 = vld [vmem:[#allocation3 + $0x28] sm:$0xff]
        %v1007 = vld [vmem:[#allocation3 + $0x30] sm:$0xff]
        %v1008 = vld [vmem:[#allocation3 + $0x38] sm:$0xff]
        %1009 = vmatpush.msra.mxu0 %v369
        %1010 = vmatpush.msra.mxu0 %v368
        %1011 = vmatpush.msra.mxu0 %v367
        %1012 = vmatpush.msra.mxu0 %v366
        %1013 = vmatpush.msra.mxu0 %v365
        %1014 = vmatpush.msra.mxu0 %v364
        %1015 = vmatpush.msra.mxu0 %v363
        %1016 = vmatpush.msra.mxu0 %v362
        %1017 = vmatpush.msra.mxu0 %v361
        %1018 = vmatpush.msra.mxu0 %v360
        %1019 = vmatpush.msra.mxu0 %v359
        %1020 = vmatpush.msra.mxu0 %v358
        %1021 = vmatpush.msra.mxu0 %v357
        %1022 = vmatpush.msra.mxu0 %v356
        %1023 = vmatpush.msra.mxu0 %v355
        %1024 = vmatpush.msra.mxu0 %v354
        %1025 = vmatmul.f32.gmra.mxu0 %v1001
        %v1026 = vpop.f32.mrf.mxu0
        %v1027 = vadd.f32 0.0, %v1026
        %1028 = vmatmul.f32.gmra.mxu0 %v1002
        %v1029 = vpop.f32.mrf.mxu0
        %v1030 = vadd.f32 0.0, %v1029
        %1031 = vmatmul.f32.gmra.mxu0 %v1003
        %v1032 = vpop.f32.mrf.mxu0
        %v1033 = vadd.f32 0.0, %v1032
        %1034 = vmatmul.f32.gmra.mxu0 %v1004
        %v1035 = vpop.f32.mrf.mxu0
        %v1036 = vadd.f32 0.0, %v1035
        %1037 = vmatmul.f32.gmra.mxu0 %v1005
        %v1038 = vpop.f32.mrf.mxu0
        %v1039 = vadd.f32 0.0, %v1038
        %1040 = vmatmul.f32.gmra.mxu0 %v1006
        %v1041 = vpop.f32.mrf.mxu0
        %v1042 = vadd.f32 0.0, %v1041
        %1043 = vmatmul.f32.gmra.mxu0 %v1007
        %v1044 = vpop.f32.mrf.mxu0
        %v1045 = vadd.f32 0.0, %v1044
        %1046 = vmatmul.f32.gmra.mxu0 %v1008
        %v1047 = vpop.f32.mrf.mxu0
        %v1048 = vadd.f32 0.0, %v1047
        %1049 = vdwg.mxu0
        %v1050 = vmul.f32 %v1027, %v1027
        %v1051 = vsub.f32 %v1036, %v1050
        %v1052 = vand.u32 2147483647, %v1051
        %v1053 = vmul.f32 %v1030, %v1030
        %v1054 = vsub.f32 %v1039, %v1053
        %v1055 = vand.u32 2147483647, %v1054
        %v1056 = vmul.f32 %v1033, %v1033
        %v1057 = vsub.f32 %v1042, %v1056
        %v1058 = vand.u32 2147483647, %v1057
        %v1059 = vmul.f32 %v1027, %v1033
        %v1060 = vsub.f32 %v1045, %v1059
        %v1061 = vmul.f32 %v1030, %v1033
        %v1062 = vsub.f32 %v1048, %v1061
        %v1063 = vmul.f32 %v1027, 2.0
        %v1064 = vmul.f32 %v1063, %v1033
        %v1065 = vadd.f32 %v1064, 0.0009
        %v1066 = vadd.f32 %v1050, %v1056
        %v1067 = vadd.f32 %v1066, 0.0009
        %v1068 = vrcp.pop %v1067
        %v1069 = vmul.f32 %v1065, %v1068
        %v1070 = vmul.f32 %v1030, 2.0
        %v1071 = vmul.f32 %v1070, %v1033
        %v1072 = vadd.f32 %v1071, 0.0009
        %v1073 = vadd.f32 %v1053, %v1056
        %v1074 = vadd.f32 %v1073, 0.0009
        %v1075 = vrcp.pop %v1074
        %v1076 = vmul.f32 %v1072, %v1075
        %v1077 = vadd.f32 %v1060, 0.0009
        %v1078 = vadd.f32 %v1052, %v1058
        %v1079 = vadd.f32 %v1078, 0.0009
        %v1080 = vrcp.pop %v1079
        %v1081 = vmul.f32 %v1077, %v1080
        %v1082 = vadd.f32 %v1062, 0.0009
        %v1083 = vadd.f32 %v1055, %v1058
        %v1084 = vadd.f32 %v1083, 0.0009
        %v1085 = vrcp.pop %v1084
        %v1086 = vmul.f32 %v1082, %v1085
        %vm1087 = vcmp.gt.f32.partialorder %v1027, %v1030
        %v1088 = vmul.f32 %v1069, %v1081
        %v1089 = vmul.f32 %v1076, %v1086
        %v1090 = vsel %vm1087, %v1088, %v1089
        %vm1091 = vcmask 31744
        %v1092 = vsel %vm1091, %v1090, 0.0
        %v1093 = vrot.slane %v1092, 4
        %v1094 = vadd.f32 %v1092, %v1093
        %v1095 = vrot.slane %v1094, 2
        %v1096 = vadd.f32 %v1094, %v1095
        %v1097 = vrot.slane %v1096, 1
        %v1098 = vadd.f32 %v1096, %v1097
        %vm1099 = vcmask 24576
        %1100 = vst.msk [vmem:[%s273] sm:$0x1] %vm1099, %v1098
        %s1101 = sand.u32 %s109, 1
        %s1102 = scalar_lea.sflag [#allocation6], %s1101
        %s1103 = sand.u32 %s109, 1
        %s1104 = scalar_lea.vmem [#allocation10], %s1103
        // Predicated region
        $region45: #{tpu_custom_call.1} parent=31 // pred_check
          %p1105 = pneg %p119
        $region46: #{tpu_custom_call.1} parent=31 // pred_check_branch
          %1107 = sbr.rel (%p1105) target = $region48
        $region47: #{tpu_custom_call.1} parent=31 // pred_region
          %1109 = vsyncadd %s1102, 0
          %s1110 = scalar_lea.hbm %s3, %s23
          %s1112 = sshll.u32 %s1104, 4
          %s1113 = int_to_ptr.vmem [resolvable:$true] %s1112
          %s1114 = sshll.u32 %s1110, 4
          %s1115 = int_to_ptr.hbm [resolvable:$true] %s1114
          %1117 = dma.vmem_to_hbm [thread:$0]  %s1113, 16, %s1115, %s1102
        $region48: #{tpu_custom_call.1} parent=31 // pred_fallthru
          _
      $region32: #{tpu_custom_call.1} parent=5 // pred_fallthru
        _
      %p1118 = scmp.le.s32.totalorder 2, %s18
      // Predicated region
      $region49: #{tpu_custom_call.1} parent=5 // pred_check
        %p1119 = pneg %p1118
      $region50: #{tpu_custom_call.1} parent=5 // pred_check_branch
        %1121 = sbr.rel (%p1119) target = $region52
      $region51: #{tpu_custom_call.1} parent=5 // pred_region
        %s1122 = ssub.s32 %s18, 2
        // Predicated region
        $region53: #{tpu_custom_call.1} parent=51 // pred_check
          %p1123 = pneg %p125
        $region54: #{tpu_custom_call.1} parent=51 // pred_check_branch
          %1125 = sbr.rel (%p1123) target = $region56
        $region55: #{tpu_custom_call.1} parent=51 // pred_region
          %s1126 = sand.u32 %s110, 1
          %s1127 = scalar_lea.sflag [#allocation6], %s1126
          %s1128 = sand.u32 %s110, 1
          %s1129 = scalar_lea.vmem [#allocation10], %s1128
          %1131 = dma.done %s1127, 16
        $region56: #{tpu_custom_call.1} parent=51 // pred_fallthru
          _
      $region52: #{tpu_custom_call.1} parent=5 // pred_fallthru
        _
    $region6: #{tpu_custom_call.1} parent=1 // loop_footer
      %s22 = sadd.s32 1, %s18
    $region7: #{tpu_custom_call.1} parent=1 // loop_footer_branch
      %17 = sbr.rel target = $region3
    $region8: #{tpu_custom_call.1} parent=1 // loop_exit
      _
    %1132 = vsyncpa [#allocation5], 1
    %s1133 = scalar_lea.sflag [#allocation5], 1
    %1134 = vsyncpa %s1133, 1
    %1135 = vsyncpa [#allocation8], 1
    %s1136 = scalar_lea.sflag [#allocation8], 1
    %1137 = vsyncpa %s1136, 1
    %1138 = vsyncpa [#allocation6], 1
    %s1139 = scalar_lea.sflag [#allocation6], 1
    %1140 = vsyncpa %s1139, 1

</llo_original>
